<compile_context>
chip_gen: v7x
topology: tpu7x:2x2x1
jax: 0.10.0
libtpu: 0.0.40
codegen_flags: <defaults>
</compile_context>

<pallas_src>
import functools

import jax
import jax.numpy as jnp
from jax.experimental import pallas as pl
from jax.experimental.pallas import tpu as pltpu


def _generator_kernel(z_ref, c_ref, wz_ref, wc_ref, bg_ref, whh_ref, wo_ref,
                      bo_ref, out_ref, gx_tm, *, seq_len, batch, hidden,
                      out_size):
    """Fused Generator forward.

    z_ref  : (B*T, Dz) f32   latent inputs, batch-major rows (row = b*T + t)
    c_ref  : (B*T, Dc) f32   condition inputs, batch-major rows
    wz_ref : (Dz, 4H)  f32   input->gate weights for the z columns
    wc_ref : (Dc, 4H)  f32   input->gate weights for the c columns
    bg_ref : (1, 4H)   f32   b_ih + b_hh
    whh_ref: (4H, 4H)  bf16  recurrent weights, rows [H:) zero-padded
    wo_ref : (1, 4H)   f32   head weights if O == 1 (cols [H:) zero), else
             (4H, O)   f32   head weights with rows [H:) zero
    bo_ref : (1, O)    f32   head bias
    out_ref: (B, T*O)  f32   batch-first, lane-major outputs
    gx_tm  : (B*T, 4H) f32   VMEM scratch: time-major gate pre-activations
    """
    T, B, H, O = seq_len, batch, hidden, out_size
    G = 4 * H

    # ---- Input projection for ALL timesteps: one MXU matmul per input -------
    gx = (jnp.dot(z_ref[...], wz_ref[...], preferred_element_type=jnp.float32)
          + jnp.dot(c_ref[...], wc_ref[...], preferred_element_type=jnp.float32)
          + bg_ref[...])                              # (B*T, 4H), batch-major

    # One-shot relayout batch-major -> time-major (row t*B + b) so every
    # recurrence step reads one contiguous (B, 4H) slab.  Simple static row
    # copies, off the critical path.
    for b_i in range(B):
        for t in range(T):
            src = b_i * T + t
            dst = t * B + b_i
            gx_tm[dst:dst + 1, :] = gx[src:src + 1, :]

    whh = whh_ref[...]                 # (4H, 4H) bf16, stays resident
    wo = wo_ref[...]
    bo = bo_ref[...]

    # Lane mask selecting the cell-candidate ("g") gate columns [2H, 3H).
    lane = jax.lax.broadcasted_iota(jnp.int32, (B, G), 1)
    is_g = jnp.logical_and(lane >= 2 * H, lane < 3 * H)

    # Full-vreg-width state: lanes [0, H) hold the true h / c; lanes [H, 4H)
    # hold bounded junk that the zero rows/cols of W_hh / W_out kill.
    h = jnp.zeros((B, G), jnp.float32)
    c = jnp.zeros((B, G), jnp.float32)

    # TODO(synk): switch to lax.fori_loop / a sequential grid axis once T grows
    # beyond ~16; full unroll is best for this tiny, latency-bound shape.
    for t in range(T):
        # Only h @ W_hh sits on the serial critical path: bf16 operands, f32
        # accumulation, one MXU pass.  (v7x MRB in-place accumulation of the
        # gx add is not expressible at the Pallas level.)
        gates = gx_tm[t * B:(t + 1) * B, :] + jnp.dot(
            h.astype(jnp.bfloat16), whh, preferred_element_type=jnp.float32)

        # sigmoid(x) = 0.5*tanh(0.5*x) + 0.5 -> ONE EUP tanh pass over the
        # whole (B, 4H) vreg covers the i/f/o sigmoids and the g tanh.
        pre = jnp.where(is_g, gates, 0.5 * gates)
        th = jnp.tanh(pre)
        act = jnp.where(is_g, th, 0.5 * th + 0.5)  # [sig(i)|sig(f)|tanh(g)|sig(o)]

        # Full-width gate combine: rotate f/g/o onto the i lanes (tile-aligned
        # self-concat + static 128-lane slices == XLU lane rotation) so every
        # VPU op below runs on full vregs instead of 32-lane sub-slices.
        act2 = jnp.concatenate([act, act], axis=1)   # (B, 8H), aligned concat
        f_al = act2[:, 1 * H:1 * H + G]              # lanes [0,H): sig(f)
        g_al = act2[:, 2 * H:2 * H + G]              # lanes [0,H): tanh(g)
        o_al = act2[:, 3 * H:3 * H + G]              # lanes [0,H): sig(o)

        c = f_al * c + act * g_al                    # lanes [0,H): f*c + i*g
        h = o_al * jnp.tanh(c)                       # lanes [0,H): o*tanh(c)

        # Linear + Tanh head (off the recurrence critical path).
        if O == 1:
            # Full-width VPU multiply + lane reduce; zero-padded w_out kills
            # the junk lanes.  Avoids a 1-column MXU matmul.
            y_t = jnp.tanh(jnp.sum(h * wo, axis=1, keepdims=True) + bo)
        else:
            y_t = jnp.tanh(jnp.dot(h, wo, preferred_element_type=jnp.float32)
                           + bo)
        # Batch-first, lane-major output slab: row b = [y_0 | y_1 | ... ].
        out_ref[:, t * O:(t + 1) * O] = y_t.astype(out_ref.dtype)


def generator_forward(z, c, kp):
    """z: (B, T, z_dim), c: (B, T, c_dim) -> (B, T, out_size).

    `kp` must come from prepare_kernel_params (kernel-ready parameter forms).
    """
    B, T, Dz = z.shape
    Dc = c.shape[2]
    H = kp["w_hh_pad"].shape[0] // 4
    O = kp["b_out"].shape[1]

    # Contiguous merges of leading dims -> layout bitcasts, no data movement.
    z2 = z.reshape(B * T, Dz)
    c2 = c.reshape(B * T, Dc)

    kernel = functools.partial(_generator_kernel, seq_len=T, batch=B,
                               hidden=H, out_size=O)
    vmem = pl.BlockSpec(memory_space=pltpu.MemorySpace.VMEM)

    out = pl.pallas_call(
        kernel,
        out_shape=jax.ShapeDtypeStruct((B, T * O), jnp.float32),
        in_specs=[vmem] * 8,
        out_specs=vmem,
        scratch_shapes=[pltpu.VMEM((B * T, 4 * H), jnp.float32)],
    )(z2, c2, kp["w_ih_z"], kp["w_ih_c"], kp["b_g"], kp["w_hh_pad"],
      kp["w_out_k"], kp["b_out"])

    # Contiguous split of the last dim -> free reshape to (B, T, O).
    return out.reshape(B, T, O)


def init_params(key, input_size, hidden, out_size):
    """LSTM + Linear parameters in 'math' layout (right-multiplication).

    Gate column order is PyTorch's [i | f | g | o].  NOTE: PyTorch stores
    weight_ih_l0 / weight_hh_l0 as (4H, in); real checkpoints must be
    transposed into these (in, 4H) forms before use.
    """
    k1, k2, k3, k4, k5, k6 = jax.random.split(key, 6)
    bound = 1.0 / jnp.sqrt(jnp.float32(hidden))
    u = lambda k, shape: jax.random.uniform(k, shape, jnp.float32, -bound, bound)
    return {
        "w_ih": u(k1, (input_size, 4 * hidden)),
        "w_hh": u(k2, (hidden, 4 * hidden)),
        "b": u(k3, (1, 4 * hidden)) + u(k4, (1, 4 * hidden)),   # b_ih + b_hh
        "w_out": u(k5, (hidden, out_size)),
        "b_out": u(k6, (1, out_size)),
    }


def prepare_kernel_params(params, z_dim, c_dim):
    """One-time preprocessing into kernel-ready tensors (not per forward call)."""
    H = params["w_hh"].shape[0]
    G = 4 * H
    O = params["w_out"].shape[1]

    w_ih = params["w_ih"]
    w_ih_z = w_ih[:z_dim]                         # (Dz, 4H)
    w_ih_c = w_ih[z_dim:z_dim + c_dim]            # (Dc, 4H)

    # Recurrent weights: zero-pad rows [H, 4H) so the full-width (junk-lane) h
    # can hit the MXU directly; bf16 storage, f32 accumulation in-kernel.
    w_hh_pad = jnp.zeros((G, G), jnp.float32).at[:H].set(params["w_hh"])
    w_hh_pad = w_hh_pad.astype(jnp.bfloat16)

    # Output head: O == 1 -> (1, 4H) zero-padded row for the VPU-reduce head;
    # otherwise (4H, O) with zero rows for an MXU head.
    if O == 1:
        w_out_k = jnp.zeros((1, G), jnp.float32).at[0, :H].set(
            params["w_out"][:, 0])
    else:
        w_out_k = jnp.zeros((G, O), jnp.float32).at[:H].set(params["w_out"])

    return {"w_ih_z": w_ih_z, "w_ih_c": w_ih_c, "b_g": params["b"],
            "w_hh_pad": w_hh_pad, "w_out_k": w_out_k, "b_out": params["b_out"]}


def _reference_forward(z, c, params, *, recurrent_dtype=jnp.float32):
    """Pure-JAX reference (lax.scan LSTM).

    recurrent_dtype=bfloat16 mirrors the kernel's bf16 h @ W_hh (f32 accum)
    for a tight numerical check; float32 gives the module's exact semantics.
    """
    x = jnp.concatenate([z, c], axis=2)           # (B, T, D)
    B, T, D = x.shape
    H = params["w_hh"].shape[0]
    hp = jax.lax.Precision.HIGHEST
    w_hh = params["w_hh"].astype(recurrent_dtype)

    def step(carry, x_t):
        h, cc = carry
        gates = (jnp.dot(x_t, params["w_ih"], precision=hp) + params["b"]
                 + jnp.dot(h.astype(recurrent_dtype), w_hh,
                           preferred_element_type=jnp.float32, precision=hp))
        i = jax.nn.sigmoid(gates[:, 0 * H:1 * H])
        f = jax.nn.sigmoid(gates[:, 1 * H:2 * H])
        g = jnp.tanh(gates[:, 2 * H:3 * H])
        o = jax.nn.sigmoid(gates[:, 3 * H:4 * H])
        cc = f * cc + i * g
        h = o * jnp.tanh(cc)
        y = jnp.tanh(jnp.dot(h, params["w_out"], precision=hp)
                     + params["b_out"])
        return (h, cc), y

    init = (jnp.zeros((B, H), jnp.float32), jnp.zeros((B, H), jnp.float32))
    _, ys = jax.lax.scan(step, init, jnp.transpose(x, (1, 0, 2)))
    return jnp.transpose(ys, (1, 0, 2))


if __name__ == "__main__":
    # Small shapes consistent with the module's forward:
    #   z: (B, T, z_dim), c: (B, T, c_dim), input_size = z_dim + c_dim
    B, T = 2, 8
    z_dim, c_dim = 6, 2
    input_size = z_dim + c_dim
    hidden = 32
    out_size = 1

    key = jax.random.PRNGKey(0)
    kz, kc, kp_key = jax.random.split(key, 3)
    z = jax.random.normal(kz, (B, T, z_dim), jnp.float32)
    c = jax.random.normal(kc, (B, T, c_dim), jnp.float32)

    params = init_params(kp_key, input_size, hidden, out_size)
    kparams = prepare_kernel_params(params, z_dim, c_dim)   # one-time prep

    fwd = jax.jit(generator_forward)
    out = jax.block_until_ready(fwd(z, c, kparams))
    assert out.shape == (B, T, out_size)

    # Tight check vs. a reference that mirrors the kernel's bf16 recurrent
    # matmul (validates gate wiring / rotations / fused projection exactly).
    ref_bf16 = _reference_forward(z, c, params, recurrent_dtype=jnp.bfloat16)
    assert jnp.allclose(out, ref_bf16, atol=2e-3, rtol=2e-3), \
        "mismatch vs bf16-matched JAX reference"

    # Looser check vs. pure-f32 module semantics (only deviation is the bf16
    # recurrent weights / hidden-state cast on the MXU path).
    ref_f32 = _reference_forward(z, c, params)
    assert jnp.allclose(out, ref_f32, atol=3e-2, rtol=0.0), \
        "mismatch vs f32 JAX reference"

    print("KERNEL_OK")
</pallas_src>

<mosaic_0001>
module attributes {stable_mosaic.version = 11 : i64} {
  func.func @_generator_kernel(%arg0: memref<16x6xf32, #tpu.memory_space<vmem>>, %arg1: memref<16x2xf32, #tpu.memory_space<vmem>>, %arg2: memref<6x128xf32, #tpu.memory_space<vmem>>, %arg3: memref<2x128xf32, #tpu.memory_space<vmem>>, %arg4: memref<1x128xf32, #tpu.memory_space<vmem>>, %arg5: memref<128x128xbf16, #tpu.memory_space<vmem>>, %arg6: memref<1x128xf32, #tpu.memory_space<vmem>>, %arg7: memref<1x1xf32, #tpu.memory_space<vmem>>, %arg8: memref<2x8xf32, #tpu.memory_space<vmem>>, %arg9: memref<16x128xf32, #tpu.memory_space<vmem>>) attributes {dimension_semantics = [], scalar_prefetch = 0 : i64, scratch_operands = 1 : i64, tpu.core_type = #tpu.core_type<tc>} {
    %c0 = arith.constant 0 : index
    %c0_0 = arith.constant 0 : index
    %0 = vector.load %arg0[%c0, %c0_0] : memref<16x6xf32, #tpu.memory_space<vmem>>, vector<16x6xf32>
    %c0_1 = arith.constant 0 : index
    %c0_2 = arith.constant 0 : index
    %1 = vector.load %arg2[%c0_1, %c0_2] : memref<6x128xf32, #tpu.memory_space<vmem>>, vector<6x128xf32>
    %cst = arith.constant dense<0.000000e+00> : vector<16x128xf32>
    %2 = tpu.matmul %0, %1, %cst {dimension_numbers = #tpu.dot_dimension_numbers<[1], [0], [0], [1], [0, 0, 1, 1], [], []>} : vector<16x6xf32>, vector<6x128xf32>, vector<16x128xf32> -> vector<16x128xf32>
    %c0_3 = arith.constant 0 : index
    %c0_4 = arith.constant 0 : index
    %3 = vector.load %arg1[%c0_3, %c0_4] : memref<16x2xf32, #tpu.memory_space<vmem>>, vector<16x2xf32>
    %c0_5 = arith.constant 0 : index
    %c0_6 = arith.constant 0 : index
    %4 = vector.load %arg3[%c0_5, %c0_6] : memref<2x128xf32, #tpu.memory_space<vmem>>, vector<2x128xf32>
    %cst_7 = arith.constant dense<0.000000e+00> : vector<16x128xf32>
    %5 = tpu.matmul %3, %4, %cst_7 {dimension_numbers = #tpu.dot_dimension_numbers<[1], [0], [0], [1], [0, 0, 1, 1], [], []>} : vector<16x2xf32>, vector<2x128xf32>, vector<16x128xf32> -> vector<16x128xf32>
    %6 = arith.addf %2, %5 : vector<16x128xf32>
    %c0_8 = arith.constant 0 : index
    %c0_9 = arith.constant 0 : index
    %7 = vector.load %arg4[%c0_8, %c0_9] : memref<1x128xf32, #tpu.memory_space<vmem>>, vector<1x128xf32>
    %8 = vector.broadcast %7 : vector<1x128xf32> to vector<16x128xf32>
    %9 = arith.addf %6, %8 : vector<16x128xf32>
    %10 = vector.extract_strided_slice %9 {offsets = [0, 0], sizes = [1, 128], strides = [1, 1]} : vector<16x128xf32> to vector<1x128xf32>
    %c0_10 = arith.constant 0 : index
    %c0_11 = arith.constant 0 : index
    %11 = vector.load %arg9[%c0_10, %c0_11] : memref<16x128xf32, #tpu.memory_space<vmem>>, vector<1x128xf32>
    tpu.vector_store %arg9[%c0_10, %c0_11], %10 {strides = array<i32>} : memref<16x128xf32, #tpu.memory_space<vmem>>, vector<1x128xf32>,
    %12 = vector.extract_strided_slice %9 {offsets = [1, 0], sizes = [1, 128], strides = [1, 1]} : vector<16x128xf32> to vector<1x128xf32>
    %c2 = arith.constant 2 : index
    %c0_12 = arith.constant 0 : index
    %13 = vector.load %arg9[%c2, %c0_12] : memref<16x128xf32, #tpu.memory_space<vmem>>, vector<1x128xf32>
    tpu.vector_store %arg9[%c2, %c0_12], %12 {strides = array<i32>} : memref<16x128xf32, #tpu.memory_space<vmem>>, vector<1x128xf32>,
    %14 = vector.extract_strided_slice %9 {offsets = [2, 0], sizes = [1, 128], strides = [1, 1]} : vector<16x128xf32> to vector<1x128xf32>
    %c4 = arith.constant 4 : index
    %c0_13 = arith.constant 0 : index
    %15 = vector.load %arg9[%c4, %c0_13] : memref<16x128xf32, #tpu.memory_space<vmem>>, vector<1x128xf32>
    tpu.vector_store %arg9[%c4, %c0_13], %14 {strides = array<i32>} : memref<16x128xf32, #tpu.memory_space<vmem>>, vector<1x128xf32>,
    %16 = vector.extract_strided_slice %9 {offsets = [3, 0], sizes = [1, 128], strides = [1, 1]} : vector<16x128xf32> to vector<1x128xf32>
    %c6 = arith.constant 6 : index
    %c0_14 = arith.constant 0 : index
    %17 = vector.load %arg9[%c6, %c0_14] : memref<16x128xf32, #tpu.memory_space<vmem>>, vector<1x128xf32>
    tpu.vector_store %arg9[%c6, %c0_14], %16 {strides = array<i32>} : memref<16x128xf32, #tpu.memory_space<vmem>>, vector<1x128xf32>,
    %18 = vector.extract_strided_slice %9 {offsets = [4, 0], sizes = [1, 128], strides = [1, 1]} : vector<16x128xf32> to vector<1x128xf32>
    %c8 = arith.constant 8 : index
    %c0_15 = arith.constant 0 : index
    %19 = vector.load %arg9[%c8, %c0_15] : memref<16x128xf32, #tpu.memory_space<vmem>>, vector<1x128xf32>
    tpu.vector_store %arg9[%c8, %c0_15], %18 {strides = array<i32>} : memref<16x128xf32, #tpu.memory_space<vmem>>, vector<1x128xf32>,
    %20 = vector.extract_strided_slice %9 {offsets = [5, 0], sizes = [1, 128], strides = [1, 1]} : vector<16x128xf32> to vector<1x128xf32>
    %c10 = arith.constant 10 : index
    %c0_16 = arith.constant 0 : index
    %21 = vector.load %arg9[%c10, %c0_16] : memref<16x128xf32, #tpu.memory_space<vmem>>, vector<1x128xf32>
    tpu.vector_store %arg9[%c10, %c0_16], %20 {strides = array<i32>} : memref<16x128xf32, #tpu.memory_space<vmem>>, vector<1x128xf32>,
    %22 = vector.extract_strided_slice %9 {offsets = [6, 0], sizes = [1, 128], strides = [1, 1]} : vector<16x128xf32> to vector<1x128xf32>
    %c12 = arith.constant 12 : index
    %c0_17 = arith.constant 0 : index
    %23 = vector.load %arg9[%c12, %c0_17] : memref<16x128xf32, #tpu.memory_space<vmem>>, vector<1x128xf32>
    tpu.vector_store %arg9[%c12, %c0_17], %22 {strides = array<i32>} : memref<16x128xf32, #tpu.memory_space<vmem>>, vector<1x128xf32>,
    %24 = vector.extract_strided_slice %9 {offsets = [7, 0], sizes = [1, 128], strides = [1, 1]} : vector<16x128xf32> to vector<1x128xf32>
    %c14 = arith.constant 14 : index
    %c0_18 = arith.constant 0 : index
    %25 = vector.load %arg9[%c14, %c0_18] : memref<16x128xf32, #tpu.memory_space<vmem>>, vector<1x128xf32>
    tpu.vector_store %arg9[%c14, %c0_18], %24 {strides = array<i32>} : memref<16x128xf32, #tpu.memory_space<vmem>>, vector<1x128xf32>,
    %26 = vector.extract_strided_slice %9 {offsets = [8, 0], sizes = [1, 128], strides = [1, 1]} : vector<16x128xf32> to vector<1x128xf32>
    %c1 = arith.constant 1 : index
    %c0_19 = arith.constant 0 : index
    %27 = vector.load %arg9[%c1, %c0_19] : memref<16x128xf32, #tpu.memory_space<vmem>>, vector<1x128xf32>
    tpu.vector_store %arg9[%c1, %c0_19], %26 {strides = array<i32>} : memref<16x128xf32, #tpu.memory_space<vmem>>, vector<1x128xf32>,
    %28 = vector.extract_strided_slice %9 {offsets = [9, 0], sizes = [1, 128], strides = [1, 1]} : vector<16x128xf32> to vector<1x128xf32>
    %c3 = arith.constant 3 : index
    %c0_20 = arith.constant 0 : index
    %29 = vector.load %arg9[%c3, %c0_20] : memref<16x128xf32, #tpu.memory_space<vmem>>, vector<1x128xf32>
    tpu.vector_store %arg9[%c3, %c0_20], %28 {strides = array<i32>} : memref<16x128xf32, #tpu.memory_space<vmem>>, vector<1x128xf32>,
    %30 = vector.extract_strided_slice %9 {offsets = [10, 0], sizes = [1, 128], strides = [1, 1]} : vector<16x128xf32> to vector<1x128xf32>
    %c5 = arith.constant 5 : index
    %c0_21 = arith.constant 0 : index
    %31 = vector.load %arg9[%c5, %c0_21] : memref<16x128xf32, #tpu.memory_space<vmem>>, vector<1x128xf32>
    tpu.vector_store %arg9[%c5, %c0_21], %30 {strides = array<i32>} : memref<16x128xf32, #tpu.memory_space<vmem>>, vector<1x128xf32>,
    %32 = vector.extract_strided_slice %9 {offsets = [11, 0], sizes = [1, 128], strides = [1, 1]} : vector<16x128xf32> to vector<1x128xf32>
    %c7 = arith.constant 7 : index
    %c0_22 = arith.constant 0 : index
    %33 = vector.load %arg9[%c7, %c0_22] : memref<16x128xf32, #tpu.memory_space<vmem>>, vector<1x128xf32>
    tpu.vector_store %arg9[%c7, %c0_22], %32 {strides = array<i32>} : memref<16x128xf32, #tpu.memory_space<vmem>>, vector<1x128xf32>,
    %34 = vector.extract_strided_slice %9 {offsets = [12, 0], sizes = [1, 128], strides = [1, 1]} : vector<16x128xf32> to vector<1x128xf32>
    %c9 = arith.constant 9 : index
    %c0_23 = arith.constant 0 : index
    %35 = vector.load %arg9[%c9, %c0_23] : memref<16x128xf32, #tpu.memory_space<vmem>>, vector<1x128xf32>
    tpu.vector_store %arg9[%c9, %c0_23], %34 {strides = array<i32>} : memref<16x128xf32, #tpu.memory_space<vmem>>, vector<1x128xf32>,
    %36 = vector.extract_strided_slice %9 {offsets = [13, 0], sizes = [1, 128], strides = [1, 1]} : vector<16x128xf32> to vector<1x128xf32>
    %c11 = arith.constant 11 : index
    %c0_24 = arith.constant 0 : index
    %37 = vector.load %arg9[%c11, %c0_24] : memref<16x128xf32, #tpu.memory_space<vmem>>, vector<1x128xf32>
    tpu.vector_store %arg9[%c11, %c0_24], %36 {strides = array<i32>} : memref<16x128xf32, #tpu.memory_space<vmem>>, vector<1x128xf32>,
    %38 = vector.extract_strided_slice %9 {offsets = [14, 0], sizes = [1, 128], strides = [1, 1]} : vector<16x128xf32> to vector<1x128xf32>
    %c13 = arith.constant 13 : index
    %c0_25 = arith.constant 0 : index
    %39 = vector.load %arg9[%c13, %c0_25] : memref<16x128xf32, #tpu.memory_space<vmem>>, vector<1x128xf32>
    tpu.vector_store %arg9[%c13, %c0_25], %38 {strides = array<i32>} : memref<16x128xf32, #tpu.memory_space<vmem>>, vector<1x128xf32>,
    %40 = vector.extract_strided_slice %9 {offsets = [15, 0], sizes = [1, 128], strides = [1, 1]} : vector<16x128xf32> to vector<1x128xf32>
    %c15 = arith.constant 15 : index
    %c0_26 = arith.constant 0 : index
    %41 = vector.load %arg9[%c15, %c0_26] : memref<16x128xf32, #tpu.memory_space<vmem>>, vector<1x128xf32>
    tpu.vector_store %arg9[%c15, %c0_26], %40 {strides = array<i32>} : memref<16x128xf32, #tpu.memory_space<vmem>>, vector<1x128xf32>,
    %c0_27 = arith.constant 0 : index
    %c0_28 = arith.constant 0 : index
    %42 = vector.load %arg5[%c0_27, %c0_28] : memref<128x128xbf16, #tpu.memory_space<vmem>>, vector<128x128xbf16>
    %c0_29 = arith.constant 0 : index
    %c0_30 = arith.constant 0 : index
    %43 = vector.load %arg6[%c0_29, %c0_30] : memref<1x128xf32, #tpu.memory_space<vmem>>, vector<1x128xf32>
    %c0_31 = arith.constant 0 : index
    %c0_32 = arith.constant 0 : index
    %44 = vector.load %arg7[%c0_31, %c0_32] : memref<1x1xf32, #tpu.memory_space<vmem>>, vector<1x1xf32>
    %45 = tpu.iota {dimensions = array<i32: 1>} : vector<2x128xi32>
    %c64_i32 = arith.constant 64 : i32
    %46 = vector.broadcast %c64_i32 : i32 to vector<2x128xi32>
    %47 = arith.cmpi sge, %45, %46 : vector<2x128xi32>
    %c96_i32 = arith.constant 96 : i32
    %48 = vector.broadcast %c96_i32 : i32 to vector<2x128xi32>
    %49 = arith.cmpi slt, %45, %48 : vector<2x128xi32>
    %50 = arith.andi %47, %49 : vector<2x128xi1>
    %cst_33 = arith.constant 0.000000e+00 : f32
    %51 = vector.broadcast %cst_33 : f32 to vector<2x128xf32>
    %cst_34 = arith.constant 0.000000e+00 : f32
    %52 = vector.broadcast %cst_34 : f32 to vector<2x128xf32>
    %c0_35 = arith.constant 0 : index
    %c0_36 = arith.constant 0 : index
    %53 = vector.load %arg9[%c0_35, %c0_36] : memref<16x128xf32, #tpu.memory_space<vmem>>, vector<2x128xf32>
    %54 = arith.truncf %51 : vector<2x128xf32> to vector<2x128xbf16>
    %cst_37 = arith.constant dense<0.000000e+00> : vector<2x128xf32>
    %55 = tpu.matmul %54, %42, %cst_37 {dimension_numbers = #tpu.dot_dimension_numbers<[1], [0], [0], [1], [0, 0, 1, 1], [], []>} : vector<2x128xbf16>, vector<128x128xbf16>, vector<2x128xf32> -> vector<2x128xf32>
    %56 = arith.addf %53, %55 : vector<2x128xf32>
    %cst_38 = arith.constant 5.000000e-01 : f32
    %57 = vector.broadcast %cst_38 : f32 to vector<2x128xf32>
    %58 = arith.mulf %57, %56 : vector<2x128xf32>
    %59 = arith.select %50, %56, %58 : vector<2x128xi1>, vector<2x128xf32>
    %60 = math.tanh %59 : vector<2x128xf32>
    %cst_39 = arith.constant 5.000000e-01 : f32
    %61 = vector.broadcast %cst_39 : f32 to vector<2x128xf32>
    %62 = arith.mulf %61, %60 : vector<2x128xf32>
    %cst_40 = arith.constant 5.000000e-01 : f32
    %63 = vector.broadcast %cst_40 : f32 to vector<2x128xf32>
    %64 = arith.addf %62, %63 : vector<2x128xf32>
    %65 = arith.select %50, %60, %64 : vector<2x128xi1>, vector<2x128xf32>
    %66 = tpu.concatenate %65, %65 in 1 : vector<2x128xf32>, vector<2x128xf32> -> vector<2x256xf32>
    %67 = vector.extract_strided_slice %66 {offsets = [0, 32], sizes = [2, 128], strides = [1, 1]} : vector<2x256xf32> to vector<2x128xf32>
    %68 = vector.extract_strided_slice %66 {offsets = [0, 64], sizes = [2, 128], strides = [1, 1]} : vector<2x256xf32> to vector<2x128xf32>
    %69 = vector.extract_strided_slice %66 {offsets = [0, 96], sizes = [2, 128], strides = [1, 1]} : vector<2x256xf32> to vector<2x128xf32>
    %70 = arith.mulf %67, %52 : vector<2x128xf32>
    %71 = arith.mulf %65, %68 : vector<2x128xf32>
    %72 = arith.addf %70, %71 : vector<2x128xf32>
    %73 = math.tanh %72 : vector<2x128xf32>
    %74 = arith.mulf %69, %73 : vector<2x128xf32>
    %75 = vector.broadcast %43 : vector<1x128xf32> to vector<2x128xf32>
    %76 = arith.mulf %74, %75 : vector<2x128xf32>
    %cst_41 = arith.constant dense<0.000000e+00> : vector<2xf32>
    %77 = vector.multi_reduction <add>, %76, %cst_41 [1] : vector<2x128xf32> to vector<2xf32>
    %78 = vector.shape_cast %77 : vector<2xf32> to vector<2x1xf32>
    %79 = vector.broadcast %44 : vector<1x1xf32> to vector<2x1xf32>
    %80 = arith.addf %78, %79 : vector<2x1xf32>
    %81 = math.tanh %80 : vector<2x1xf32>
    %c0_42 = arith.constant 0 : index
    %c0_43 = arith.constant 0 : index
    %82 = vector.load %arg8[%c0_42, %c0_43] : memref<2x8xf32, #tpu.memory_space<vmem>>, vector<2x1xf32>
    tpu.vector_store %arg8[%c0_42, %c0_43], %81 {strides = array<i32>} : memref<2x8xf32, #tpu.memory_space<vmem>>, vector<2x1xf32>,
    %c2_44 = arith.constant 2 : index
    %c0_45 = arith.constant 0 : index
    %83 = vector.load %arg9[%c2_44, %c0_45] : memref<16x128xf32, #tpu.memory_space<vmem>>, vector<2x128xf32>
    %84 = arith.truncf %74 : vector<2x128xf32> to vector<2x128xbf16>
    %cst_46 = arith.constant dense<0.000000e+00> : vector<2x128xf32>
    %85 = tpu.matmul %84, %42, %cst_46 {dimension_numbers = #tpu.dot_dimension_numbers<[1], [0], [0], [1], [0, 0, 1, 1], [], []>} : vector<2x128xbf16>, vector<128x128xbf16>, vector<2x128xf32> -> vector<2x128xf32>
    %86 = arith.addf %83, %85 : vector<2x128xf32>
    %cst_47 = arith.constant 5.000000e-01 : f32
    %87 = vector.broadcast %cst_47 : f32 to vector<2x128xf32>
    %88 = arith.mulf %87, %86 : vector<2x128xf32>
    %89 = arith.select %50, %86, %88 : vector<2x128xi1>, vector<2x128xf32>
    %90 = math.tanh %89 : vector<2x128xf32>
    %cst_48 = arith.constant 5.000000e-01 : f32
    %91 = vector.broadcast %cst_48 : f32 to vector<2x128xf32>
    %92 = arith.mulf %91, %90 : vector<2x128xf32>
    %cst_49 = arith.constant 5.000000e-01 : f32
    %93 = vector.broadcast %cst_49 : f32 to vector<2x128xf32>
    %94 = arith.addf %92, %93 : vector<2x128xf32>
    %95 = arith.select %50, %90, %94 : vector<2x128xi1>, vector<2x128xf32>
    %96 = tpu.concatenate %95, %95 in 1 : vector<2x128xf32>, vector<2x128xf32> -> vector<2x256xf32>
    %97 = vector.extract_strided_slice %96 {offsets = [0, 32], sizes = [2, 128], strides = [1, 1]} : vector<2x256xf32> to vector<2x128xf32>
    %98 = vector.extract_strided_slice %96 {offsets = [0, 64], sizes = [2, 128], strides = [1, 1]} : vector<2x256xf32> to vector<2x128xf32>
    %99 = vector.extract_strided_slice %96 {offsets = [0, 96], sizes = [2, 128], strides = [1, 1]} : vector<2x256xf32> to vector<2x128xf32>
    %100 = arith.mulf %97, %72 : vector<2x128xf32>
    %101 = arith.mulf %95, %98 : vector<2x128xf32>
    %102 = arith.addf %100, %101 : vector<2x128xf32>
    %103 = math.tanh %102 : vector<2x128xf32>
    %104 = arith.mulf %99, %103 : vector<2x128xf32>
    %105 = vector.broadcast %43 : vector<1x128xf32> to vector<2x128xf32>
    %106 = arith.mulf %104, %105 : vector<2x128xf32>
    %cst_50 = arith.constant dense<0.000000e+00> : vector<2xf32>
    %107 = vector.multi_reduction <add>, %106, %cst_50 [1] : vector<2x128xf32> to vector<2xf32>
    %108 = vector.shape_cast %107 : vector<2xf32> to vector<2x1xf32>
    %109 = vector.broadcast %44 : vector<1x1xf32> to vector<2x1xf32>
    %110 = arith.addf %108, %109 : vector<2x1xf32>
    %111 = math.tanh %110 : vector<2x1xf32>
    %c0_51 = arith.constant 0 : index
    %c1_52 = arith.constant 1 : index
    %112 = vector.load %arg8[%c0_51, %c1_52] : memref<2x8xf32, #tpu.memory_space<vmem>>, vector<2x1xf32>
    tpu.vector_store %arg8[%c0_51, %c1_52], %111 {strides = array<i32>} : memref<2x8xf32, #tpu.memory_space<vmem>>, vector<2x1xf32>,
    %c4_53 = arith.constant 4 : index
    %c0_54 = arith.constant 0 : index
    %113 = vector.load %arg9[%c4_53, %c0_54] : memref<16x128xf32, #tpu.memory_space<vmem>>, vector<2x128xf32>
    %114 = arith.truncf %104 : vector<2x128xf32> to vector<2x128xbf16>
    %cst_55 = arith.constant dense<0.000000e+00> : vector<2x128xf32>
    %115 = tpu.matmul %114, %42, %cst_55 {dimension_numbers = #tpu.dot_dimension_numbers<[1], [0], [0], [1], [0, 0, 1, 1], [], []>} : vector<2x128xbf16>, vector<128x128xbf16>, vector<2x128xf32> -> vector<2x128xf32>
    %116 = arith.addf %113, %115 : vector<2x128xf32>
    %cst_56 = arith.constant 5.000000e-01 : f32
    %117 = vector.broadcast %cst_56 : f32 to vector<2x128xf32>
    %118 = arith.mulf %117, %116 : vector<2x128xf32>
    %119 = arith.select %50, %116, %118 : vector<2x128xi1>, vector<2x128xf32>
    %120 = math.tanh %119 : vector<2x128xf32>
    %cst_57 = arith.constant 5.000000e-01 : f32
    %121 = vector.broadcast %cst_57 : f32 to vector<2x128xf32>
    %122 = arith.mulf %121, %120 : vector<2x128xf32>
    %cst_58 = arith.constant 5.000000e-01 : f32
    %123 = vector.broadcast %cst_58 : f32 to vector<2x128xf32>
    %124 = arith.addf %122, %123 : vector<2x128xf32>
    %125 = arith.select %50, %120, %124 : vector<2x128xi1>, vector<2x128xf32>
    %126 = tpu.concatenate %125, %125 in 1 : vector<2x128xf32>, vector<2x128xf32> -> vector<2x256xf32>
    %127 = vector.extract_strided_slice %126 {offsets = [0, 32], sizes = [2, 128], strides = [1, 1]} : vector<2x256xf32> to vector<2x128xf32>
    %128 = vector.extract_strided_slice %126 {offsets = [0, 64], sizes = [2, 128], strides = [1, 1]} : vector<2x256xf32> to vector<2x128xf32>
    %129 = vector.extract_strided_slice %126 {offsets = [0, 96], sizes = [2, 128], strides = [1, 1]} : vector<2x256xf32> to vector<2x128xf32>
    %130 = arith.mulf %127, %102 : vector<2x128xf32>
    %131 = arith.mulf %125, %128 : vector<2x128xf32>
    %132 = arith.addf %130, %131 : vector<2x128xf32>
    %133 = math.tanh %132 : vector<2x128xf32>
    %134 = arith.mulf %129, %133 : vector<2x128xf32>
    %135 = vector.broadcast %43 : vector<1x128xf32> to vector<2x128xf32>
    %136 = arith.mulf %134, %135 : vector<2x128xf32>
    %cst_59 = arith.constant dense<0.000000e+00> : vector<2xf32>
    %137 = vector.multi_reduction <add>, %136, %cst_59 [1] : vector<2x128xf32> to vector<2xf32>
    %138 = vector.shape_cast %137 : vector<2xf32> to vector<2x1xf32>
    %139 = vector.broadcast %44 : vector<1x1xf32> to vector<2x1xf32>
    %140 = arith.addf %138, %139 : vector<2x1xf32>
    %141 = math.tanh %140 : vector<2x1xf32>
    %c0_60 = arith.constant 0 : index
    %c2_61 = arith.constant 2 : index
    %142 = vector.load %arg8[%c0_60, %c2_61] : memref<2x8xf32, #tpu.memory_space<vmem>>, vector<2x1xf32>
    tpu.vector_store %arg8[%c0_60, %c2_61], %141 {strides = array<i32>} : memref<2x8xf32, #tpu.memory_space<vmem>>, vector<2x1xf32>,
    %c6_62 = arith.constant 6 : index
    %c0_63 = arith.constant 0 : index
    %143 = vector.load %arg9[%c6_62, %c0_63] : memref<16x128xf32, #tpu.memory_space<vmem>>, vector<2x128xf32>
    %144 = arith.truncf %134 : vector<2x128xf32> to vector<2x128xbf16>
    %cst_64 = arith.constant dense<0.000000e+00> : vector<2x128xf32>
    %145 = tpu.matmul %144, %42, %cst_64 {dimension_numbers = #tpu.dot_dimension_numbers<[1], [0], [0], [1], [0, 0, 1, 1], [], []>} : vector<2x128xbf16>, vector<128x128xbf16>, vector<2x128xf32> -> vector<2x128xf32>
    %146 = arith.addf %143, %145 : vector<2x128xf32>
    %cst_65 = arith.constant 5.000000e-01 : f32
    %147 = vector.broadcast %cst_65 : f32 to vector<2x128xf32>
    %148 = arith.mulf %147, %146 : vector<2x128xf32>
    %149 = arith.select %50, %146, %148 : vector<2x128xi1>, vector<2x128xf32>
    %150 = math.tanh %149 : vector<2x128xf32>
    %cst_66 = arith.constant 5.000000e-01 : f32
    %151 = vector.broadcast %cst_66 : f32 to vector<2x128xf32>
    %152 = arith.mulf %151, %150 : vector<2x128xf32>
    %cst_67 = arith.constant 5.000000e-01 : f32
    %153 = vector.broadcast %cst_67 : f32 to vector<2x128xf32>
    %154 = arith.addf %152, %153 : vector<2x128xf32>
    %155 = arith.select %50, %150, %154 : vector<2x128xi1>, vector<2x128xf32>
    %156 = tpu.concatenate %155, %155 in 1 : vector<2x128xf32>, vector<2x128xf32> -> vector<2x256xf32>
    %157 = vector.extract_strided_slice %156 {offsets = [0, 32], sizes = [2, 128], strides = [1, 1]} : vector<2x256xf32> to vector<2x128xf32>
    %158 = vector.extract_strided_slice %156 {offsets = [0, 64], sizes = [2, 128], strides = [1, 1]} : vector<2x256xf32> to vector<2x128xf32>
    %159 = vector.extract_strided_slice %156 {offsets = [0, 96], sizes = [2, 128], strides = [1, 1]} : vector<2x256xf32> to vector<2x128xf32>
    %160 = arith.mulf %157, %132 : vector<2x128xf32>
    %161 = arith.mulf %155, %158 : vector<2x128xf32>
    %162 = arith.addf %160, %161 : vector<2x128xf32>
    %163 = math.tanh %162 : vector<2x128xf32>
    %164 = arith.mulf %159, %163 : vector<2x128xf32>
    %165 = vector.broadcast %43 : vector<1x128xf32> to vector<2x128xf32>
    %166 = arith.mulf %164, %165 : vector<2x128xf32>
    %cst_68 = arith.constant dense<0.000000e+00> : vector<2xf32>
    %167 = vector.multi_reduction <add>, %166, %cst_68 [1] : vector<2x128xf32> to vector<2xf32>
    %168 = vector.shape_cast %167 : vector<2xf32> to vector<2x1xf32>
    %169 = vector.broadcast %44 : vector<1x1xf32> to vector<2x1xf32>
    %170 = arith.addf %168, %169 : vector<2x1xf32>
    %171 = math.tanh %170 : vector<2x1xf32>
    %c0_69 = arith.constant 0 : index
    %c3_70 = arith.constant 3 : index
    %172 = vector.load %arg8[%c0_69, %c3_70] : memref<2x8xf32, #tpu.memory_space<vmem>>, vector<2x1xf32>
    tpu.vector_store %arg8[%c0_69, %c3_70], %171 {strides = array<i32>} : memref<2x8xf32, #tpu.memory_space<vmem>>, vector<2x1xf32>,
    %c8_71 = arith.constant 8 : index
    %c0_72 = arith.constant 0 : index
    %173 = vector.load %arg9[%c8_71, %c0_72] : memref<16x128xf32, #tpu.memory_space<vmem>>, vector<2x128xf32>
    %174 = arith.truncf %164 : vector<2x128xf32> to vector<2x128xbf16>
    %cst_73 = arith.constant dense<0.000000e+00> : vector<2x128xf32>
    %175 = tpu.matmul %174, %42, %cst_73 {dimension_numbers = #tpu.dot_dimension_numbers<[1], [0], [0], [1], [0, 0, 1, 1], [], []>} : vector<2x128xbf16>, vector<128x128xbf16>, vector<2x128xf32> -> vector<2x128xf32>
    %176 = arith.addf %173, %175 : vector<2x128xf32>
    %cst_74 = arith.constant 5.000000e-01 : f32
    %177 = vector.broadcast %cst_74 : f32 to vector<2x128xf32>
    %178 = arith.mulf %177, %176 : vector<2x128xf32>
    %179 = arith.select %50, %176, %178 : vector<2x128xi1>, vector<2x128xf32>
    %180 = math.tanh %179 : vector<2x128xf32>
    %cst_75 = arith.constant 5.000000e-01 : f32
    %181 = vector.broadcast %cst_75 : f32 to vector<2x128xf32>
    %182 = arith.mulf %181, %180 : vector<2x128xf32>
    %cst_76 = arith.constant 5.000000e-01 : f32
    %183 = vector.broadcast %cst_76 : f32 to vector<2x128xf32>
    %184 = arith.addf %182, %183 : vector<2x128xf32>
    %185 = arith.select %50, %180, %184 : vector<2x128xi1>, vector<2x128xf32>
    %186 = tpu.concatenate %185, %185 in 1 : vector<2x128xf32>, vector<2x128xf32> -> vector<2x256xf32>
    %187 = vector.extract_strided_slice %186 {offsets = [0, 32], sizes = [2, 128], strides = [1, 1]} : vector<2x256xf32> to vector<2x128xf32>
    %188 = vector.extract_strided_slice %186 {offsets = [0, 64], sizes = [2, 128], strides = [1, 1]} : vector<2x256xf32> to vector<2x128xf32>
    %189 = vector.extract_strided_slice %186 {offsets = [0, 96], sizes = [2, 128], strides = [1, 1]} : vector<2x256xf32> to vector<2x128xf32>
    %190 = arith.mulf %187, %162 : vector<2x128xf32>
    %191 = arith.mulf %185, %188 : vector<2x128xf32>
    %192 = arith.addf %190, %191 : vector<2x128xf32>
    %193 = math.tanh %192 : vector<2x128xf32>
    %194 = arith.mulf %189, %193 : vector<2x128xf32>
    %195 = vector.broadcast %43 : vector<1x128xf32> to vector<2x128xf32>
    %196 = arith.mulf %194, %195 : vector<2x128xf32>
    %cst_77 = arith.constant dense<0.000000e+00> : vector<2xf32>
    %197 = vector.multi_reduction <add>, %196, %cst_77 [1] : vector<2x128xf32> to vector<2xf32>
    %198 = vector.shape_cast %197 : vector<2xf32> to vector<2x1xf32>
    %199 = vector.broadcast %44 : vector<1x1xf32> to vector<2x1xf32>
    %200 = arith.addf %198, %199 : vector<2x1xf32>
    %201 = math.tanh %200 : vector<2x1xf32>
    %c0_78 = arith.constant 0 : index
    %c4_79 = arith.constant 4 : index
    %202 = vector.load %arg8[%c0_78, %c4_79] : memref<2x8xf32, #tpu.memory_space<vmem>>, vector<2x1xf32>
    tpu.vector_store %arg8[%c0_78, %c4_79], %201 {strides = array<i32>} : memref<2x8xf32, #tpu.memory_space<vmem>>, vector<2x1xf32>,
    %c10_80 = arith.constant 10 : index
    %c0_81 = arith.constant 0 : index
    %203 = vector.load %arg9[%c10_80, %c0_81] : memref<16x128xf32, #tpu.memory_space<vmem>>, vector<2x128xf32>
    %204 = arith.truncf %194 : vector<2x128xf32> to vector<2x128xbf16>
    %cst_82 = arith.constant dense<0.000000e+00> : vector<2x128xf32>
    %205 = tpu.matmul %204, %42, %cst_82 {dimension_numbers = #tpu.dot_dimension_numbers<[1], [0], [0], [1], [0, 0, 1, 1], [], []>} : vector<2x128xbf16>, vector<128x128xbf16>, vector<2x128xf32> -> vector<2x128xf32>
    %206 = arith.addf %203, %205 : vector<2x128xf32>
    %cst_83 = arith.constant 5.000000e-01 : f32
    %207 = vector.broadcast %cst_83 : f32 to vector<2x128xf32>
    %208 = arith.mulf %207, %206 : vector<2x128xf32>
    %209 = arith.select %50, %206, %208 : vector<2x128xi1>, vector<2x128xf32>
    %210 = math.tanh %209 : vector<2x128xf32>
    %cst_84 = arith.constant 5.000000e-01 : f32
    %211 = vector.broadcast %cst_84 : f32 to vector<2x128xf32>
    %212 = arith.mulf %211, %210 : vector<2x128xf32>
    %cst_85 = arith.constant 5.000000e-01 : f32
    %213 = vector.broadcast %cst_85 : f32 to vector<2x128xf32>
    %214 = arith.addf %212, %213 : vector<2x128xf32>
    %215 = arith.select %50, %210, %214 : vector<2x128xi1>, vector<2x128xf32>
    %216 = tpu.concatenate %215, %215 in 1 : vector<2x128xf32>, vector<2x128xf32> -> vector<2x256xf32>
    %217 = vector.extract_strided_slice %216 {offsets = [0, 32], sizes = [2, 128], strides = [1, 1]} : vector<2x256xf32> to vector<2x128xf32>
    %218 = vector.extract_strided_slice %216 {offsets = [0, 64], sizes = [2, 128], strides = [1, 1]} : vector<2x256xf32> to vector<2x128xf32>
    %219 = vector.extract_strided_slice %216 {offsets = [0, 96], sizes = [2, 128], strides = [1, 1]} : vector<2x256xf32> to vector<2x128xf32>
    %220 = arith.mulf %217, %192 : vector<2x128xf32>
    %221 = arith.mulf %215, %218 : vector<2x128xf32>
    %222 = arith.addf %220, %221 : vector<2x128xf32>
    %223 = math.tanh %222 : vector<2x128xf32>
    %224 = arith.mulf %219, %223 : vector<2x128xf32>
    %225 = vector.broadcast %43 : vector<1x128xf32> to vector<2x128xf32>
    %226 = arith.mulf %224, %225 : vector<2x128xf32>
    %cst_86 = arith.constant dense<0.000000e+00> : vector<2xf32>
    %227 = vector.multi_reduction <add>, %226, %cst_86 [1] : vector<2x128xf32> to vector<2xf32>
    %228 = vector.shape_cast %227 : vector<2xf32> to vector<2x1xf32>
    %229 = vector.broadcast %44 : vector<1x1xf32> to vector<2x1xf32>
    %230 = arith.addf %228, %229 : vector<2x1xf32>
    %231 = math.tanh %230 : vector<2x1xf32>
    %c0_87 = arith.constant 0 : index
    %c5_88 = arith.constant 5 : index
    %232 = vector.load %arg8[%c0_87, %c5_88] : memref<2x8xf32, #tpu.memory_space<vmem>>, vector<2x1xf32>
    tpu.vector_store %arg8[%c0_87, %c5_88], %231 {strides = array<i32>} : memref<2x8xf32, #tpu.memory_space<vmem>>, vector<2x1xf32>,
    %c12_89 = arith.constant 12 : index
    %c0_90 = arith.constant 0 : index
    %233 = vector.load %arg9[%c12_89, %c0_90] : memref<16x128xf32, #tpu.memory_space<vmem>>, vector<2x128xf32>
    %234 = arith.truncf %224 : vector<2x128xf32> to vector<2x128xbf16>
    %cst_91 = arith.constant dense<0.000000e+00> : vector<2x128xf32>
    %235 = tpu.matmul %234, %42, %cst_91 {dimension_numbers = #tpu.dot_dimension_numbers<[1], [0], [0], [1], [0, 0, 1, 1], [], []>} : vector<2x128xbf16>, vector<128x128xbf16>, vector<2x128xf32> -> vector<2x128xf32>
    %236 = arith.addf %233, %235 : vector<2x128xf32>
    %cst_92 = arith.constant 5.000000e-01 : f32
    %237 = vector.broadcast %cst_92 : f32 to vector<2x128xf32>
    %238 = arith.mulf %237, %236 : vector<2x128xf32>
    %239 = arith.select %50, %236, %238 : vector<2x128xi1>, vector<2x128xf32>
    %240 = math.tanh %239 : vector<2x128xf32>
    %cst_93 = arith.constant 5.000000e-01 : f32
    %241 = vector.broadcast %cst_93 : f32 to vector<2x128xf32>
    %242 = arith.mulf %241, %240 : vector<2x128xf32>
    %cst_94 = arith.constant 5.000000e-01 : f32
    %243 = vector.broadcast %cst_94 : f32 to vector<2x128xf32>
    %244 = arith.addf %242, %243 : vector<2x128xf32>
    %245 = arith.select %50, %240, %244 : vector<2x128xi1>, vector<2x128xf32>
    %246 = tpu.concatenate %245, %245 in 1 : vector<2x128xf32>, vector<2x128xf32> -> vector<2x256xf32>
    %247 = vector.extract_strided_slice %246 {offsets = [0, 32], sizes = [2, 128], strides = [1, 1]} : vector<2x256xf32> to vector<2x128xf32>
    %248 = vector.extract_strided_slice %246 {offsets = [0, 64], sizes = [2, 128], strides = [1, 1]} : vector<2x256xf32> to vector<2x128xf32>
    %249 = vector.extract_strided_slice %246 {offsets = [0, 96], sizes = [2, 128], strides = [1, 1]} : vector<2x256xf32> to vector<2x128xf32>
    %250 = arith.mulf %247, %222 : vector<2x128xf32>
    %251 = arith.mulf %245, %248 : vector<2x128xf32>
    %252 = arith.addf %250, %251 : vector<2x128xf32>
    %253 = math.tanh %252 : vector<2x128xf32>
    %254 = arith.mulf %249, %253 : vector<2x128xf32>
    %255 = vector.broadcast %43 : vector<1x128xf32> to vector<2x128xf32>
    %256 = arith.mulf %254, %255 : vector<2x128xf32>
    %cst_95 = arith.constant dense<0.000000e+00> : vector<2xf32>
    %257 = vector.multi_reduction <add>, %256, %cst_95 [1] : vector<2x128xf32> to vector<2xf32>
    %258 = vector.shape_cast %257 : vector<2xf32> to vector<2x1xf32>
    %259 = vector.broadcast %44 : vector<1x1xf32> to vector<2x1xf32>
    %260 = arith.addf %258, %259 : vector<2x1xf32>
    %261 = math.tanh %260 : vector<2x1xf32>
    %c0_96 = arith.constant 0 : index
    %c6_97 = arith.constant 6 : index
    %262 = vector.load %arg8[%c0_96, %c6_97] : memref<2x8xf32, #tpu.memory_space<vmem>>, vector<2x1xf32>
    tpu.vector_store %arg8[%c0_96, %c6_97], %261 {strides = array<i32>} : memref<2x8xf32, #tpu.memory_space<vmem>>, vector<2x1xf32>,
    %c14_98 = arith.constant 14 : index
    %c0_99 = arith.constant 0 : index
    %263 = vector.load %arg9[%c14_98, %c0_99] : memref<16x128xf32, #tpu.memory_space<vmem>>, vector<2x128xf32>
    %264 = arith.truncf %254 : vector<2x128xf32> to vector<2x128xbf16>
    %cst_100 = arith.constant dense<0.000000e+00> : vector<2x128xf32>
    %265 = tpu.matmul %264, %42, %cst_100 {dimension_numbers = #tpu.dot_dimension_numbers<[1], [0], [0], [1], [0, 0, 1, 1], [], []>} : vector<2x128xbf16>, vector<128x128xbf16>, vector<2x128xf32> -> vector<2x128xf32>
    %266 = arith.addf %263, %265 : vector<2x128xf32>
    %cst_101 = arith.constant 5.000000e-01 : f32
    %267 = vector.broadcast %cst_101 : f32 to vector<2x128xf32>
    %268 = arith.mulf %267, %266 : vector<2x128xf32>
    %269 = arith.select %50, %266, %268 : vector<2x128xi1>, vector<2x128xf32>
    %270 = math.tanh %269 : vector<2x128xf32>
    %cst_102 = arith.constant 5.000000e-01 : f32
    %271 = vector.broadcast %cst_102 : f32 to vector<2x128xf32>
    %272 = arith.mulf %271, %270 : vector<2x128xf32>
    %cst_103 = arith.constant 5.000000e-01 : f32
    %273 = vector.broadcast %cst_103 : f32 to vector<2x128xf32>
    %274 = arith.addf %272, %273 : vector<2x128xf32>
    %275 = arith.select %50, %270, %274 : vector<2x128xi1>, vector<2x128xf32>
    %276 = tpu.concatenate %275, %275 in 1 : vector<2x128xf32>, vector<2x128xf32> -> vector<2x256xf32>
    %277 = vector.extract_strided_slice %276 {offsets = [0, 32], sizes = [2, 128], strides = [1, 1]} : vector<2x256xf32> to vector<2x128xf32>
    %278 = vector.extract_strided_slice %276 {offsets = [0, 64], sizes = [2, 128], strides = [1, 1]} : vector<2x256xf32> to vector<2x128xf32>
    %279 = vector.extract_strided_slice %276 {offsets = [0, 96], sizes = [2, 128], strides = [1, 1]} : vector<2x256xf32> to vector<2x128xf32>
    %280 = arith.mulf %277, %252 : vector<2x128xf32>
    %281 = arith.mulf %275, %278 : vector<2x128xf32>
    %282 = arith.addf %280, %281 : vector<2x128xf32>
    %283 = math.tanh %282 : vector<2x128xf32>
    %284 = arith.mulf %279, %283 : vector<2x128xf32>
    %285 = vector.broadcast %43 : vector<1x128xf32> to vector<2x128xf32>
    %286 = arith.mulf %284, %285 : vector<2x128xf32>
    %cst_104 = arith.constant dense<0.000000e+00> : vector<2xf32>
    %287 = vector.multi_reduction <add>, %286, %cst_104 [1] : vector<2x128xf32> to vector<2xf32>
    %288 = vector.shape_cast %287 : vector<2xf32> to vector<2x1xf32>
    %289 = vector.broadcast %44 : vector<1x1xf32> to vector<2x1xf32>
    %290 = arith.addf %288, %289 : vector<2x1xf32>
    %291 = math.tanh %290 : vector<2x1xf32>
    %c0_105 = arith.constant 0 : index
    %c7_106 = arith.constant 7 : index
    %292 = vector.load %arg8[%c0_105, %c7_106] : memref<2x8xf32, #tpu.memory_space<vmem>>, vector<2x1xf32>
    tpu.vector_store %arg8[%c0_105, %c7_106], %291 {strides = array<i32>} : memref<2x8xf32, #tpu.memory_space<vmem>>, vector<2x1xf32>,
    return
  }
}

</mosaic_0001>

<llo_original>
// kernel: generator_forward.1
$region0: #{generator_forward.1}
  #allocation0 [shape = 'u32[]', space=smem, size = 0x4, offset = 0x4, fixed_abs, tag = 'smem constant byte address 0x4 - core index']
  #allocation1 [shape = 'u32[144,128]{1,0:T(1,128)}', space=vmem, size = 0x12000, scoped, tag = 'internal scratch']
  #allocation2 [shape = 'f32[16,128]{1,0:T(8,128)}', space=vmem, size = 0x2000, scoped, tag = 'scratch operand']
  #allocation3 [shape = 'f32[1,1]{1,0:T(1,128)S(1)}', space=vmem, size = 0x200, scoped, tag = 'scoped memory for generator_forward.1']
  %s0 = inlined_call_operand.vmem [shape: f32[16,6], index: 0, kind: input, shape index: {}]
  %s1 = inlined_call_operand.vmem [shape: f32[16,2], index: 1, kind: input, shape index: {}]
  %s2 = inlined_call_operand.vmem [shape: f32[6,128], index: 2, kind: input, shape index: {}]
  %s3 = inlined_call_operand.vmem [shape: f32[2,128], index: 3, kind: input, shape index: {}]
  %s4 = inlined_call_operand.hbm [shape: f32[1,128], index: 4, kind: input, shape index: {}]
  %s5 = inlined_call_operand.vmem [shape: bf16[128,128], index: 5, kind: input, shape index: {}]
  %s6 = inlined_call_operand.vmem [shape: f32[1,128], index: 6, kind: input, shape index: {}]
  %s7 = inlined_call_operand.<no memory space> [shape: f32[1,1], index: 7, kind: input, shape index: {}]
  %s8 = inlined_call_operand.hbm [shape: f32[2,8], index: 8, kind: output, shape index: {}]
  %s9 = sld [smem:[#allocation0]]
  $region46: #{generator_forward.1} parent=0
    _
  %s11 = ssub.s32 1, %s9
  %s12 = scalar_select 0, %s11, %s9
  %v13 = vstv %s7
  %14 = vst [vmem:[#allocation3] sm:$0x1] %v13
  $region1: #{generator_forward.1} parent=0
    #allocation4 [shape = 'u8[512]{0}', space=vmem, size = 0x400, scoped, tag = 'input window, operand 4, single buffered']
    #allocation5 [shape = 's32[1]{0}', space=sflag, size = 0x4, scoped, tag = 'scoped memory for generator_forward.1']
    #allocation6 [shape = 's32[1]{0}', space=sflag, size = 0x4, scoped, tag = 'scoped memory for generator_forward.1']
    #allocation7 [shape = 'u8[1024]{0}', space=vmem, size = 0x400, scoped, tag = 'output window, operand 0, single buffered']
    %15 = vsyncpa [#allocation5], 0
    %16 = vsyncpa [#allocation6], 0
    // Predicated region
    $region2: #{generator_forward.1} parent=1 // pred_check
      _
    $region3: #{generator_forward.1} parent=1 // pred_check_branch
      %18 = sbr.rel (0) target = $region5
    $region4: #{generator_forward.1} parent=1 // pred_region
      _
    $region5: #{generator_forward.1} parent=1 // pred_fallthru
      _
    // Predicated region
    $region6: #{generator_forward.1} parent=1 // pred_check
      _
    $region7: #{generator_forward.1} parent=1 // pred_check_branch
      %20 = sbr.rel (0) target = $region9
    $region8: #{generator_forward.1} parent=1 // pred_region
      _
    $region9: #{generator_forward.1} parent=1 // pred_fallthru
      _
    // Predicated region
    $region10: #{generator_forward.1} parent=1 // pred_check
      _
    $region11: #{generator_forward.1} parent=1 // pred_check_branch
      %22 = sbr.rel (0) target = $region13
    $region12: #{generator_forward.1} parent=1 // pred_region
      _
    $region13: #{generator_forward.1} parent=1 // pred_fallthru
      _
    // Predicated region
    $region14: #{generator_forward.1} parent=1 // pred_check
      _
    $region15: #{generator_forward.1} parent=1 // pred_check_branch
      %24 = sbr.rel (0) target = $region17
    $region16: #{generator_forward.1} parent=1 // pred_region
      _
    $region17: #{generator_forward.1} parent=1 // pred_fallthru
      _
    // Predicated region
    $region18: #{generator_forward.1} parent=1 // pred_check
      _
    $region19: #{generator_forward.1} parent=1 // pred_check_branch
      %26 = sbr.rel (0) target = $region21
    $region20: #{generator_forward.1} parent=1 // pred_region
      %s28 = ssub.s32 16, 16
      %29 = vsyncadd [#allocation5], %s28
      %s31 = sshll.u32 [#allocation4], 4
      %s32 = int_to_ptr.vmem [resolvable:$true] %s31
      %34 = dma.hbm_to_vmem [thread:$0]  %s4, 16, %s32, [#allocation5]
    $region21: #{generator_forward.1} parent=1 // pred_fallthru
      _
    // Predicated region
    $region22: #{generator_forward.1} parent=1 // pred_check
      _
    $region23: #{generator_forward.1} parent=1 // pred_check_branch
      %36 = sbr.rel (0) target = $region25
    $region24: #{generator_forward.1} parent=1 // pred_region
      _
    $region25: #{generator_forward.1} parent=1 // pred_fallthru
      _
    // Predicated region
    $region26: #{generator_forward.1} parent=1 // pred_check
      _
    $region27: #{generator_forward.1} parent=1 // pred_check_branch
      %38 = sbr.rel (0) target = $region29
    $region28: #{generator_forward.1} parent=1 // pred_region
      _
    $region29: #{generator_forward.1} parent=1 // pred_fallthru
      _
    // Predicated region
    $region30: #{generator_forward.1} parent=1 // pred_check
      _
    $region31: #{generator_forward.1} parent=1 // pred_check_branch
      %40 = sbr.rel (0) target = $region33
    $region32: #{generator_forward.1} parent=1 // pred_region
      _
    $region33: #{generator_forward.1} parent=1 // pred_fallthru
      _
    // Predicated region
    $region34: #{generator_forward.1} parent=1 // pred_check
      _
    $region35: #{generator_forward.1} parent=1 // pred_check_branch
      %42 = sbr.rel (0) target = $region37
    $region36: #{generator_forward.1} parent=1 // pred_region
      %43 = dma.done [#allocation5], 16
    $region37: #{generator_forward.1} parent=1 // pred_fallthru
      _
    %v45 = vld [vmem:[%s0] sm:$0xff]
    %v46 = vld [vmem:[%s0 + $0x8] sm:$0xff]
    %v47 = vld [vmem:[%s2] sm:$0x3f]
    %v48 = vld [vmem:[%s1] sm:$0xff]
    %v49 = vld [vmem:[%s1 + $0x8] sm:$0xff]
    %v50 = vld [vmem:[%s3] sm:$0x3]
    %vm51 = vcmask 15360
    %v53 = vsel %vm51, %v48, 0
    %v56 = vsel %vm51, %v49, 0
    %vm58 = vcmask 1041408
    %v60 = vsel %vm58, %v50, 0
    %62 = vmatprep.subr.mxu0 0.0
    %63 = vmatpush1.msra.mxu0 %v60
    %64 = vmatprep.subr.mxu0 0.0
    %65 = vmatpush1.msra.mxu0 0.0
    %66 = vmatprep.subr.mxu0 0.0
    %67 = vmatpush1.msra.mxu0 0.0
    %68 = vmatprep.subr.mxu0 0.0
    %69 = vmatpush1.msra.mxu0 0.0
    %70 = vmatprep.subr.mxu0 0.0
    %71 = vmatpush1.msra.mxu0 0.0
    %72 = vmatprep.subr.mxu0 0.0
    %73 = vmatpush1.msra.mxu0 0.0
    %74 = vmatprep.subr.mxu0 0.0
    %75 = vmatpush1.msra.mxu0 0.0
    %76 = vmatprep.subr.mxu0 0.0
    %77 = vmatpush1.msra.mxu0 0.0
    %78 = vmatprep.subr.mxu0 0.0
    %79 = vmatpush1.msra.mxu0 0.0
    %80 = vmatprep.subr.mxu0 0.0
    %81 = vmatpush1.msra.mxu0 0.0
    %82 = vmatprep.subr.mxu0 0.0
    %83 = vmatpush1.msra.mxu0 0.0
    %84 = vmatprep.subr.mxu0 0.0
    %85 = vmatpush1.msra.mxu0 0.0
    %86 = vmatprep.subr.mxu0 0.0
    %87 = vmatpush1.msra.mxu0 0.0
    %88 = vmatprep.subr.mxu0 0.0
    %89 = vmatpush1.msra.mxu0 0.0
    %90 = vmatprep.subr.mxu0 0.0
    %91 = vmatpush1.msra.mxu0 0.0
    %92 = vmatprep.subr.mxu0 0.0
    %93 = vmatpush1.msra.mxu0 0.0
    %94 = vmatprep.subr.mxu0 0.0
    %95 = vmatpush1.msra.mxu0 0.0
    %96 = vmatprep.subr.mxu0 0.0
    %97 = vmatpush1.msra.mxu0 0.0
    %98 = vmatprep.subr.mxu0 0.0
    %99 = vmatpush1.msra.mxu0 0.0
    %100 = vmatprep.subr.mxu0 0.0
    %101 = vmatpush1.msra.mxu0 0.0
    %102 = vmatprep.subr.mxu0 0.0
    %103 = vmatpush1.msra.mxu0 0.0
    %104 = vmatprep.subr.mxu0 0.0
    %105 = vmatpush1.msra.mxu0 0.0
    %106 = vmatprep.subr.mxu0 0.0
    %107 = vmatpush1.msra.mxu0 0.0
    %108 = vmatprep.subr.mxu0 0.0
    %109 = vmatpush1.msra.mxu0 0.0
    %110 = vmatprep.subr.mxu0 0.0
    %111 = vmatpush1.msra.mxu0 0.0
    %112 = vmatprep.subr.mxu0 0.0
    %113 = vmatpush1.msra.mxu0 0.0
    %114 = vmatprep.subr.mxu0 0.0
    %115 = vmatpush1.msra.mxu0 0.0
    %116 = vmatprep.subr.mxu0 0.0
    %117 = vmatpush1.msra.mxu0 0.0
    %118 = vmatprep.subr.mxu0 0.0
    %119 = vmatpush1.msra.mxu0 0.0
    %120 = vmatprep.subr.mxu0 0.0
    %121 = vmatpush1.msra.mxu0 0.0
    %122 = vmatprep.subr.mxu0 0.0
    %123 = vmatpush1.msra.mxu0 0.0
    %124 = vmatprep.subr.mxu0 0.0
    %125 = vmatpush1.msra.mxu0 0.0
    %126 = vmatprep.mubr.f32.mxu0 0.0
    %127 = vmatmul.mubr.f32.gmra.mrb[0].mxu0 %v53
    %v128 = vpop.f32.mrb[0].mxu0
    %v129 = vadd.f32 0.0, %v128
    %v130 = vpop.f32.mrb[0].mxu0
    %131 = vmatprep.mubr.f32.mxu0 0.0
    %132 = vmatmul.mubr.f32.gmra.mrb[0].mxu0 %v56
    %v133 = vpop.f32.mrb[0].mxu0
    %v134 = vadd.f32 0.0, %v133
    %v135 = vpop.f32.mrb[0].mxu0
    %136 = vdwg.mxu0
    %vm137 = vcmask 48128
    %v139 = vsel %vm137, %v45, 0
    %v142 = vsel %vm137, %v46, 0
    %vm144 = vcmask 1045504
    %v146 = vsel %vm144, %v47, 0
    %148 = vmatprep.subr.mxu0 0.0
    %149 = vmatpush1.msra.mxu0 %v146
    %150 = vmatprep.subr.mxu0 0.0
    %151 = vmatpush1.msra.mxu0 0.0
    %152 = vmatprep.subr.mxu0 0.0
    %153 = vmatpush1.msra.mxu0 0.0
    %154 = vmatprep.subr.mxu0 0.0
    %155 = vmatpush1.msra.mxu0 0.0
    %156 = vmatprep.subr.mxu0 0.0
    %157 = vmatpush1.msra.mxu0 0.0
    %158 = vmatprep.subr.mxu0 0.0
    %159 = vmatpush1.msra.mxu0 0.0
    %160 = vmatprep.subr.mxu0 0.0
    %161 = vmatpush1.msra.mxu0 0.0
    %162 = vmatprep.subr.mxu0 0.0
    %163 = vmatpush1.msra.mxu0 0.0
    %164 = vmatprep.subr.mxu0 0.0
    %165 = vmatpush1.msra.mxu0 0.0
    %166 = vmatprep.subr.mxu0 0.0
    %167 = vmatpush1.msra.mxu0 0.0
    %168 = vmatprep.subr.mxu0 0.0
    %169 = vmatpush1.msra.mxu0 0.0
    %170 = vmatprep.subr.mxu0 0.0
    %171 = vmatpush1.msra.mxu0 0.0
    %172 = vmatprep.subr.mxu0 0.0
    %173 = vmatpush1.msra.mxu0 0.0
    %174 = vmatprep.subr.mxu0 0.0
    %175 = vmatpush1.msra.mxu0 0.0
    %176 = vmatprep.subr.mxu0 0.0
    %177 = vmatpush1.msra.mxu0 0.0
    %178 = vmatprep.subr.mxu0 0.0
    %179 = vmatpush1.msra.mxu0 0.0
    %180 = vmatprep.subr.mxu0 0.0
    %181 = vmatpush1.msra.mxu0 0.0
    %182 = vmatprep.subr.mxu0 0.0
    %183 = vmatpush1.msra.mxu0 0.0
    %184 = vmatprep.subr.mxu0 0.0
    %185 = vmatpush1.msra.mxu0 0.0
    %186 = vmatprep.subr.mxu0 0.0
    %187 = vmatpush1.msra.mxu0 0.0
    %188 = vmatprep.subr.mxu0 0.0
    %189 = vmatpush1.msra.mxu0 0.0
    %190 = vmatprep.subr.mxu0 0.0
    %191 = vmatpush1.msra.mxu0 0.0
    %192 = vmatprep.subr.mxu0 0.0
    %193 = vmatpush1.msra.mxu0 0.0
    %194 = vmatprep.subr.mxu0 0.0
    %195 = vmatpush1.msra.mxu0 0.0
    %196 = vmatprep.subr.mxu0 0.0
    %197 = vmatpush1.msra.mxu0 0.0
    %198 = vmatprep.subr.mxu0 0.0
    %199 = vmatpush1.msra.mxu0 0.0
    %200 = vmatprep.subr.mxu0 0.0
    %201 = vmatpush1.msra.mxu0 0.0
    %202 = vmatprep.subr.mxu0 0.0
    %203 = vmatpush1.msra.mxu0 0.0
    %204 = vmatprep.subr.mxu0 0.0
    %205 = vmatpush1.msra.mxu0 0.0
    %206 = vmatprep.subr.mxu0 0.0
    %207 = vmatpush1.msra.mxu0 0.0
    %208 = vmatprep.subr.mxu0 0.0
    %209 = vmatpush1.msra.mxu0 0.0
    %210 = vmatprep.subr.mxu0 0.0
    %211 = vmatpush1.msra.mxu0 0.0
    %212 = vmatprep.mubr.f32.mxu0 0.0
    %213 = vmatmul.mubr.f32.gmra.mrb[0].mxu0 %v139
    %v214 = vpop.f32.mrb[0].mxu0
    %v215 = vadd.f32 %v129, %v214
    %v216 = vpop.f32.mrb[0].mxu0
    %217 = vmatprep.mubr.f32.mxu0 0.0
    %218 = vmatmul.mubr.f32.gmra.mrb[0].mxu0 %v142
    %v219 = vpop.f32.mrb[0].mxu0
    %v220 = vadd.f32 %v134, %v219
    %v221 = vpop.f32.mrb[0].mxu0
    %222 = vdwg.mxu0
    %v223 = vld [vmem:[#allocation4] sm:$0x1]
    %v225 = vlaneseq
    %v226 = vshrl.u32 %v225, 7
    %v227 = vsub.s32 0, %v226
    %v228 = vrot.slane %v223, %v227
    %v230 = vadd.f32 %v215, %v228
    %v231 = vadd.f32 %v220, %v228
    %232 = vst [vmem:[#allocation2] sm:$0x1] %v230
    %233 = vst [vmem:[#allocation2 + $0x1] sm:$0x2] %v230
    %234 = vst [vmem:[#allocation2 + $0x2] sm:$0x4] %v230
    %235 = vst [vmem:[#allocation2 + $0x3] sm:$0x8] %v230
    %236 = vst [vmem:[#allocation2 + $0x4] sm:$0x10] %v230
    %237 = vst [vmem:[#allocation2 + $0x5] sm:$0x20] %v230
    %238 = vst [vmem:[#allocation2 + $0x6] sm:$0x40] %v230
    %239 = vst [vmem:[#allocation2 + $0x7] sm:$0x80] %v230
    %240 = vst [vmem:[#allocation2 + $0x1] sm:$0x1] %v231
    %241 = vst [vmem:[#allocation2 + $0x2] sm:$0x2] %v231
    %242 = vst [vmem:[#allocation2 + $0x3] sm:$0x4] %v231
    %243 = vst [vmem:[#allocation2 + $0x4] sm:$0x8] %v231
    %244 = vst [vmem:[#allocation2 + $0x5] sm:$0x10] %v231
    %245 = vst [vmem:[#allocation2 + $0x6] sm:$0x20] %v231
    %246 = vst [vmem:[#allocation2 + $0x7] sm:$0x40] %v231
    %247 = vst [vmem:[#allocation2 + $0x8] sm:$0x80] %v231
    %v248 = vld [vmem:[%s5] sm:$0xf]
    %v249 = vld [vmem:[%s5 + $0x4] sm:$0xf]
    %v250 = vld [vmem:[%s5 + $0x8] sm:$0xf]
    %v251 = vld [vmem:[%s5 + $0xc] sm:$0xf]
    %v252 = vld [vmem:[%s5 + $0x10] sm:$0xf]
    %v253 = vld [vmem:[%s5 + $0x14] sm:$0xf]
    %v254 = vld [vmem:[%s5 + $0x18] sm:$0xf]
    %v255 = vld [vmem:[%s5 + $0x1c] sm:$0xf]
    %v256 = vld [vmem:[%s5 + $0x20] sm:$0xf]
    %v257 = vld [vmem:[%s5 + $0x24] sm:$0xf]
    %v258 = vld [vmem:[%s5 + $0x28] sm:$0xf]
    %v259 = vld [vmem:[%s5 + $0x2c] sm:$0xf]
    %v260 = vld [vmem:[%s5 + $0x30] sm:$0xf]
    %v261 = vld [vmem:[%s5 + $0x34] sm:$0xf]
    %v262 = vld [vmem:[%s5 + $0x38] sm:$0xf]
    %v263 = vld [vmem:[%s5 + $0x3c] sm:$0xf]
    %v264 = vld [vmem:[%s6] sm:$0x1]
    %v265 = vld [vmem:[#allocation3] sm:$0x1]
    %v266 = vlaneseq
    %v267 = vand.u32 %v266, 127
    %vm268 = vcmp.ge.s32.totalorder %v267, 64
    %vm269 = vcmp.lt.s32.totalorder %v267, 96
    %vm270 = vmand %vm268, %vm269
    %v271 = vld [vmem:[#allocation2] sm:$0x3]
    %v288 = vunpack.c.l.b16 %v248
    %v289 = vunpack.c.l.b16 %v249
    %v290 = vunpack.c.l.b16 %v250
    %v291 = vunpack.c.l.b16 %v251
    %v292 = vunpack.c.l.b16 %v252
    %v293 = vunpack.c.l.b16 %v253
    %v294 = vunpack.c.l.b16 %v254
    %v295 = vunpack.c.l.b16 %v255
    %v296 = vunpack.c.l.b16 %v256
    %v297 = vunpack.c.l.b16 %v257
    %v298 = vunpack.c.l.b16 %v258
    %v299 = vunpack.c.l.b16 %v259
    %v300 = vunpack.c.l.b16 %v260
    %v301 = vunpack.c.l.b16 %v261
    %v302 = vunpack.c.l.b16 %v262
    %v303 = vunpack.c.l.b16 %v263
    %v304 = vpack.c.b16 %v289, %v288
    %v305 = vpack.c.b16 %v291, %v290
    %v306 = vpack.c.b16 %v293, %v292
    %v307 = vpack.c.b16 %v295, %v294
    %v308 = vpack.c.b16 %v297, %v296
    %v309 = vpack.c.b16 %v299, %v298
    %v310 = vpack.c.b16 %v301, %v300
    %v311 = vpack.c.b16 %v303, %v302
    %320 = vmatprep.subr.bf16.mxu0 0
    %321 = vmatpush1.bf16.msra.mxu0 %v304
    %322 = vmatprep.subr.bf16.mxu0 0
    %323 = vmatpush1.bf16.msra.mxu0 %v305
    %324 = vmatprep.subr.bf16.mxu0 0
    %325 = vmatpush1.bf16.msra.mxu0 %v306
    %326 = vmatprep.subr.bf16.mxu0 0
    %327 = vmatpush1.bf16.msra.mxu0 %v307
    %328 = vmatprep.subr.bf16.mxu0 0
    %329 = vmatpush1.bf16.msra.mxu0 %v308
    %330 = vmatprep.subr.bf16.mxu0 0
    %331 = vmatpush1.bf16.msra.mxu0 %v309
    %332 = vmatprep.subr.bf16.mxu0 0
    %333 = vmatpush1.bf16.msra.mxu0 %v310
    %334 = vmatprep.subr.bf16.mxu0 0
    %335 = vmatpush1.bf16.msra.mxu0 %v311
    %336 = vmatprep.subr.bf16.mxu0 0
    %337 = vmatpush1.bf16.msra.mxu0 0
    %338 = vmatprep.subr.bf16.mxu0 0
    %339 = vmatpush1.bf16.msra.mxu0 0
    %340 = vmatprep.subr.bf16.mxu0 0
    %341 = vmatpush1.bf16.msra.mxu0 0
    %342 = vmatprep.subr.bf16.mxu0 0
    %343 = vmatpush1.bf16.msra.mxu0 0
    %344 = vmatprep.subr.bf16.mxu0 0
    %345 = vmatpush1.bf16.msra.mxu0 0
    %346 = vmatprep.subr.bf16.mxu0 0
    %347 = vmatpush1.bf16.msra.mxu0 0
    %348 = vmatprep.subr.bf16.mxu0 0
    %349 = vmatpush1.bf16.msra.mxu0 0
    %350 = vmatprep.subr.bf16.mxu0 0
    %351 = vmatpush1.bf16.msra.mxu0 0
    %352 = vmatprep.mubr.bf16.mxu0 0
    %353 = vmatmul.mubr.bf16.gmra.mrb[0].mxu0 0
    %v354 = vpop.f32.mrb[0].mxu0
    %v355 = vadd.f32 0.0, %v354
    %v356 = vpop.f32.mrb[0].mxu0
    %v357 = vpop.f32.mrb[0].mxu0
    %v358 = vpop.f32.mrb[0].mxu0
    %359 = vdwg.mxu0
    %v360 = vadd.f32 %v271, %v355
    %v361 = vmul.f32 %v360, 0.5
    %v362 = vsel %vm270, %v360, %v361
    %v363 = vtanh.pop %v362
    %v364 = vmul.f32 %v363, 0.5
    %v365 = vadd.f32 %v364, 0.5
    %v366 = vsel %vm270, %v363, %v365
    %v367 = vmul.f32 %v366, 0.0
    %369 = vrot.lane.b32.xlu0 %v366, 64
    %v370 = vpop.permute.xlu0 %369
    %v372 = vmul.f32 %v366, %v370
    %374 = vrot.lane.b32.xlu0 %v372, 32
    %v375 = vpop.permute.xlu0 %374
    %v377 = vadd.f32 %v367, %v375
    %v378 = vtanh.pop %v377
    %380 = vrot.lane.b32.xlu0 %v378, 64
    %v381 = vpop.permute.xlu0 %380
    %v383 = vmul.f32 %v366, %v381
    %v385 = vlaneseq
    %v386 = vshrl.u32 %v385, 7
    %v387 = vsub.s32 0, %v386
    %v388 = vrot.slane %v264, %v387
    %389 = vrot.lane.b32.xlu0 %v388, 96
    %v390 = vpop.permute.xlu0 %389
    %v392 = vmul.f32 %v383, %v390
    %394 = vrot.lane.b32.xlu0 %v392, 32
    %v395 = vpop.permute.xlu0 %394
    %vm396 = vcmask 261120
    %v397 = vsel %vm396, %v395, %v395
    %v399 = vsel %vm58, %v397, 0.0
    %400 = vadd.xlane.f32.xlu0 %v399
    %v401 = vpop.xlane.xlu0 %400
    %v403 = vlaneseq
    %v404 = vshrl.u32 %v403, 7
    %v405 = vsub.s32 0, %v404
    %v406 = vrot.slane %v265, %v405
    %v408 = vadd.f32 %v401, %v406
    %v409 = vtanh.pop %v408
    %vm410 = vcmask 1024
    %411 = vst.msk [vmem:[#allocation7] sm:$0x3] %vm410, %v409
    %v412 = vld [vmem:[#allocation2 + $0x2] sm:$0x3]
    %v413 = vpack.c.bf16 %v383, %v383
    %415 = vrot.lane.b32.xlu0 %v413, 32
    %v416 = vpop.permute.xlu0 %415
    %vm417 = vcmask 261120
    %v418 = vsel %vm417, %v416, %v416
    %420 = vmatprep.subr.bf16.mxu0 0
    %421 = vmatpush1.bf16.msra.mxu0 %v304
    %422 = vmatprep.subr.bf16.mxu0 0
    %423 = vmatpush1.bf16.msra.mxu0 %v305
    %424 = vmatprep.subr.bf16.mxu0 0
    %425 = vmatpush1.bf16.msra.mxu0 %v306
    %426 = vmatprep.subr.bf16.mxu0 0
    %427 = vmatpush1.bf16.msra.mxu0 %v307
    %428 = vmatprep.subr.bf16.mxu0 0
    %429 = vmatpush1.bf16.msra.mxu0 %v308
    %430 = vmatprep.subr.bf16.mxu0 0
    %431 = vmatpush1.bf16.msra.mxu0 %v309
    %432 = vmatprep.subr.bf16.mxu0 0
    %433 = vmatpush1.bf16.msra.mxu0 %v310
    %434 = vmatprep.subr.bf16.mxu0 0
    %435 = vmatpush1.bf16.msra.mxu0 %v311
    %436 = vmatprep.subr.bf16.mxu0 0
    %437 = vmatpush1.bf16.msra.mxu0 0
    %438 = vmatprep.subr.bf16.mxu0 0
    %439 = vmatpush1.bf16.msra.mxu0 0
    %440 = vmatprep.subr.bf16.mxu0 0
    %441 = vmatpush1.bf16.msra.mxu0 0
    %442 = vmatprep.subr.bf16.mxu0 0
    %443 = vmatpush1.bf16.msra.mxu0 0
    %444 = vmatprep.subr.bf16.mxu0 0
    %445 = vmatpush1.bf16.msra.mxu0 0
    %446 = vmatprep.subr.bf16.mxu0 0
    %447 = vmatpush1.bf16.msra.mxu0 0
    %448 = vmatprep.subr.bf16.mxu0 0
    %449 = vmatpush1.bf16.msra.mxu0 0
    %450 = vmatprep.subr.bf16.mxu0 0
    %451 = vmatpush1.bf16.msra.mxu0 0
    %452 = vmatprep.mubr.bf16.mxu0 0
    %453 = vmatmul.mubr.bf16.gmra.mrb[0].mxu0 %v418
    %v454 = vpop.f32.mrb[0].mxu0
    %v455 = vadd.f32 0.0, %v454
    %v456 = vpop.f32.mrb[0].mxu0
    %v457 = vpop.f32.mrb[0].mxu0
    %v458 = vpop.f32.mrb[0].mxu0
    %459 = vdwg.mxu0
    %v460 = vadd.f32 %v412, %v455
    %v461 = vmul.f32 %v460, 0.5
    %v462 = vsel %vm270, %v460, %v461
    %v463 = vtanh.pop %v462
    %v464 = vmul.f32 %v463, 0.5
    %v465 = vadd.f32 %v464, 0.5
    %v466 = vsel %vm270, %v463, %v465
    %v467 = vmul.f32 %v466, %v377
    %469 = vrot.lane.b32.xlu0 %v466, 64
    %v470 = vpop.permute.xlu0 %469
    %v472 = vmul.f32 %v466, %v470
    %474 = vrot.lane.b32.xlu0 %v472, 32
    %v475 = vpop.permute.xlu0 %474
    %v477 = vadd.f32 %v467, %v475
    %v478 = vtanh.pop %v477
    %480 = vrot.lane.b32.xlu0 %v478, 64
    %v481 = vpop.permute.xlu0 %480
    %v483 = vmul.f32 %v466, %v481
    %v484 = vmul.f32 %v483, %v390
    %486 = vrot.lane.b32.xlu0 %v484, 32
    %v487 = vpop.permute.xlu0 %486
    %v488 = vsel %vm396, %v487, %v487
    %v490 = vsel %vm58, %v488, 0.0
    %491 = vadd.xlane.f32.xlu0 %v490
    %v492 = vpop.xlane.xlu0 %491
    %v493 = vadd.f32 %v492, %v406
    %v494 = vtanh.pop %v493
    %496 = vrot.lane.b32.xlu0 %v494, 1
    %v497 = vpop.permute.xlu0 %496
    %vm499 = vcmask 9224
    %500 = vst.msk [vmem:[#allocation7] sm:$0x3] %vm499, %v497
    %v501 = vld [vmem:[#allocation2 + $0x4] sm:$0x3]
    %v502 = vpack.c.bf16 %v483, %v483
    %504 = vrot.lane.b32.xlu0 %v502, 32
    %v505 = vpop.permute.xlu0 %504
    %v506 = vsel %vm417, %v505, %v505
    %508 = vmatprep.subr.bf16.mxu0 0
    %509 = vmatpush1.bf16.msra.mxu0 %v304
    %510 = vmatprep.subr.bf16.mxu0 0
    %511 = vmatpush1.bf16.msra.mxu0 %v305
    %512 = vmatprep.subr.bf16.mxu0 0
    %513 = vmatpush1.bf16.msra.mxu0 %v306
    %514 = vmatprep.subr.bf16.mxu0 0
    %515 = vmatpush1.bf16.msra.mxu0 %v307
    %516 = vmatprep.subr.bf16.mxu0 0
    %517 = vmatpush1.bf16.msra.mxu0 %v308
    %518 = vmatprep.subr.bf16.mxu0 0
    %519 = vmatpush1.bf16.msra.mxu0 %v309
    %520 = vmatprep.subr.bf16.mxu0 0
    %521 = vmatpush1.bf16.msra.mxu0 %v310
    %522 = vmatprep.subr.bf16.mxu0 0
    %523 = vmatpush1.bf16.msra.mxu0 %v311
    %524 = vmatprep.subr.bf16.mxu0 0
    %525 = vmatpush1.bf16.msra.mxu0 0
    %526 = vmatprep.subr.bf16.mxu0 0
    %527 = vmatpush1.bf16.msra.mxu0 0
    %528 = vmatprep.subr.bf16.mxu0 0
    %529 = vmatpush1.bf16.msra.mxu0 0
    %530 = vmatprep.subr.bf16.mxu0 0
    %531 = vmatpush1.bf16.msra.mxu0 0
    %532 = vmatprep.subr.bf16.mxu0 0
    %533 = vmatpush1.bf16.msra.mxu0 0
    %534 = vmatprep.subr.bf16.mxu0 0
    %535 = vmatpush1.bf16.msra.mxu0 0
    %536 = vmatprep.subr.bf16.mxu0 0
    %537 = vmatpush1.bf16.msra.mxu0 0
    %538 = vmatprep.subr.bf16.mxu0 0
    %539 = vmatpush1.bf16.msra.mxu0 0
    %540 = vmatprep.mubr.bf16.mxu0 0
    %541 = vmatmul.mubr.bf16.gmra.mrb[0].mxu0 %v506
    %v542 = vpop.f32.mrb[0].mxu0
    %v543 = vadd.f32 0.0, %v542
    %v544 = vpop.f32.mrb[0].mxu0
    %v545 = vpop.f32.mrb[0].mxu0
    %v546 = vpop.f32.mrb[0].mxu0
    %547 = vdwg.mxu0
    %v548 = vadd.f32 %v501, %v543
    %v549 = vmul.f32 %v548, 0.5
    %v550 = vsel %vm270, %v548, %v549
    %v551 = vtanh.pop %v550
    %v552 = vmul.f32 %v551, 0.5
    %v553 = vadd.f32 %v552, 0.5
    %v554 = vsel %vm270, %v551, %v553
    %v555 = vmul.f32 %v554, %v477
    %557 = vrot.lane.b32.xlu0 %v554, 64
    %v558 = vpop.permute.xlu0 %557
    %v560 = vmul.f32 %v554, %v558
    %562 = vrot.lane.b32.xlu0 %v560, 32
    %v563 = vpop.permute.xlu0 %562
    %v565 = vadd.f32 %v555, %v563
    %v566 = vtanh.pop %v565
    %568 = vrot.lane.b32.xlu0 %v566, 64
    %v569 = vpop.permute.xlu0 %568
    %v571 = vmul.f32 %v554, %v569
    %v572 = vmul.f32 %v571, %v390
    %574 = vrot.lane.b32.xlu0 %v572, 32
    %v575 = vpop.permute.xlu0 %574
    %v576 = vsel %vm396, %v575, %v575
    %v578 = vsel %vm58, %v576, 0.0
    %579 = vadd.xlane.f32.xlu0 %v578
    %v580 = vpop.xlane.xlu0 %579
    %v581 = vadd.f32 %v580, %v406
    %v582 = vtanh.pop %v581
    %584 = vrot.lane.b32.xlu0 %v582, 2
    %v585 = vpop.permute.xlu0 %584
    %vm587 = vcmask 17424
    %588 = vst.msk [vmem:[#allocation7] sm:$0x3] %vm587, %v585
    %v589 = vld [vmem:[#allocation2 + $0x6] sm:$0x3]
    %v590 = vpack.c.bf16 %v571, %v571
    %592 = vrot.lane.b32.xlu0 %v590, 32
    %v593 = vpop.permute.xlu0 %592
    %v594 = vsel %vm417, %v593, %v593
    %596 = vmatprep.subr.bf16.mxu0 0
    %597 = vmatpush1.bf16.msra.mxu0 %v304
    %598 = vmatprep.subr.bf16.mxu0 0
    %599 = vmatpush1.bf16.msra.mxu0 %v305
    %600 = vmatprep.subr.bf16.mxu0 0
    %601 = vmatpush1.bf16.msra.mxu0 %v306
    %602 = vmatprep.subr.bf16.mxu0 0
    %603 = vmatpush1.bf16.msra.mxu0 %v307
    %604 = vmatprep.subr.bf16.mxu0 0
    %605 = vmatpush1.bf16.msra.mxu0 %v308
    %606 = vmatprep.subr.bf16.mxu0 0
    %607 = vmatpush1.bf16.msra.mxu0 %v309
    %608 = vmatprep.subr.bf16.mxu0 0
    %609 = vmatpush1.bf16.msra.mxu0 %v310
    %610 = vmatprep.subr.bf16.mxu0 0
    %611 = vmatpush1.bf16.msra.mxu0 %v311
    %612 = vmatprep.subr.bf16.mxu0 0
    %613 = vmatpush1.bf16.msra.mxu0 0
    %614 = vmatprep.subr.bf16.mxu0 0
    %615 = vmatpush1.bf16.msra.mxu0 0
    %616 = vmatprep.subr.bf16.mxu0 0
    %617 = vmatpush1.bf16.msra.mxu0 0
    %618 = vmatprep.subr.bf16.mxu0 0
    %619 = vmatpush1.bf16.msra.mxu0 0
    %620 = vmatprep.subr.bf16.mxu0 0
    %621 = vmatpush1.bf16.msra.mxu0 0
    %622 = vmatprep.subr.bf16.mxu0 0
    %623 = vmatpush1.bf16.msra.mxu0 0
    %624 = vmatprep.subr.bf16.mxu0 0
    %625 = vmatpush1.bf16.msra.mxu0 0
    %626 = vmatprep.subr.bf16.mxu0 0
    %627 = vmatpush1.bf16.msra.mxu0 0
    %628 = vmatprep.mubr.bf16.mxu0 0
    %629 = vmatmul.mubr.bf16.gmra.mrb[0].mxu0 %v594
    %v630 = vpop.f32.mrb[0].mxu0
    %v631 = vadd.f32 0.0, %v630
    %v632 = vpop.f32.mrb[0].mxu0
    %v633 = vpop.f32.mrb[0].mxu0
    %v634 = vpop.f32.mrb[0].mxu0
    %635 = vdwg.mxu0
    %v636 = vadd.f32 %v589, %v631
    %v637 = vmul.f32 %v636, 0.5
    %v638 = vsel %vm270, %v636, %v637
    %v639 = vtanh.pop %v638
    %v640 = vmul.f32 %v639, 0.5
    %v641 = vadd.f32 %v640, 0.5
    %v642 = vsel %vm270, %v639, %v641
    %v643 = vmul.f32 %v642, %v565
    %645 = vrot.lane.b32.xlu0 %v642, 64
    %v646 = vpop.permute.xlu0 %645
    %v648 = vmul.f32 %v642, %v646
    %650 = vrot.lane.b32.xlu0 %v648, 32
    %v651 = vpop.permute.xlu0 %650
    %v653 = vadd.f32 %v643, %v651
    %v654 = vtanh.pop %v653
    %656 = vrot.lane.b32.xlu0 %v654, 64
    %v657 = vpop.permute.xlu0 %656
    %v659 = vmul.f32 %v642, %v657
    %v660 = vmul.f32 %v659, %v390
    %662 = vrot.lane.b32.xlu0 %v660, 32
    %v663 = vpop.permute.xlu0 %662
    %v664 = vsel %vm396, %v663, %v663
    %v666 = vsel %vm58, %v664, 0.0
    %667 = vadd.xlane.f32.xlu0 %v666
    %v668 = vpop.xlane.xlu0 %667
    %v669 = vadd.f32 %v668, %v406
    %v670 = vtanh.pop %v669
    %672 = vrot.lane.b32.xlu0 %v670, 3
    %v673 = vpop.permute.xlu0 %672
    %vm675 = vcmask 25624
    %676 = vst.msk [vmem:[#allocation7] sm:$0x3] %vm675, %v673
    %v677 = vld [vmem:[#allocation2 + $0x8] sm:$0x3]
    %v678 = vpack.c.bf16 %v659, %v659
    %680 = vrot.lane.b32.xlu0 %v678, 32
    %v681 = vpop.permute.xlu0 %680
    %v682 = vsel %vm417, %v681, %v681
    %684 = vmatprep.subr.bf16.mxu0 0
    %685 = vmatpush1.bf16.msra.mxu0 %v304
    %686 = vmatprep.subr.bf16.mxu0 0
    %687 = vmatpush1.bf16.msra.mxu0 %v305
    %688 = vmatprep.subr.bf16.mxu0 0
    %689 = vmatpush1.bf16.msra.mxu0 %v306
    %690 = vmatprep.subr.bf16.mxu0 0
    %691 = vmatpush1.bf16.msra.mxu0 %v307
    %692 = vmatprep.subr.bf16.mxu0 0
    %693 = vmatpush1.bf16.msra.mxu0 %v308
    %694 = vmatprep.subr.bf16.mxu0 0
    %695 = vmatpush1.bf16.msra.mxu0 %v309
    %696 = vmatprep.subr.bf16.mxu0 0
    %697 = vmatpush1.bf16.msra.mxu0 %v310
    %698 = vmatprep.subr.bf16.mxu0 0
    %699 = vmatpush1.bf16.msra.mxu0 %v311
    %700 = vmatprep.subr.bf16.mxu0 0
    %701 = vmatpush1.bf16.msra.mxu0 0
    %702 = vmatprep.subr.bf16.mxu0 0
    %703 = vmatpush1.bf16.msra.mxu0 0
    %704 = vmatprep.subr.bf16.mxu0 0
    %705 = vmatpush1.bf16.msra.mxu0 0
    %706 = vmatprep.subr.bf16.mxu0 0
    %707 = vmatpush1.bf16.msra.mxu0 0
    %708 = vmatprep.subr.bf16.mxu0 0
    %709 = vmatpush1.bf16.msra.mxu0 0
    %710 = vmatprep.subr.bf16.mxu0 0
    %711 = vmatpush1.bf16.msra.mxu0 0
    %712 = vmatprep.subr.bf16.mxu0 0
    %713 = vmatpush1.bf16.msra.mxu0 0
    %714 = vmatprep.subr.bf16.mxu0 0
    %715 = vmatpush1.bf16.msra.mxu0 0
    %716 = vmatprep.mubr.bf16.mxu0 0
    %717 = vmatmul.mubr.bf16.gmra.mrb[0].mxu0 %v682
    %v718 = vpop.f32.mrb[0].mxu0
    %v719 = vadd.f32 0.0, %v718
    %v720 = vpop.f32.mrb[0].mxu0
    %v721 = vpop.f32.mrb[0].mxu0
    %v722 = vpop.f32.mrb[0].mxu0
    %723 = vdwg.mxu0
    %v724 = vadd.f32 %v677, %v719
    %v725 = vmul.f32 %v724, 0.5
    %v726 = vsel %vm270, %v724, %v725
    %v727 = vtanh.pop %v726
    %v728 = vmul.f32 %v727, 0.5
    %v729 = vadd.f32 %v728, 0.5
    %v730 = vsel %vm270, %v727, %v729
    %v731 = vmul.f32 %v730, %v653
    %733 = vrot.lane.b32.xlu0 %v730, 64
    %v734 = vpop.permute.xlu0 %733
    %v736 = vmul.f32 %v730, %v734
    %738 = vrot.lane.b32.xlu0 %v736, 32
    %v739 = vpop.permute.xlu0 %738
    %v741 = vadd.f32 %v731, %v739
    %v742 = vtanh.pop %v741
    %744 = vrot.lane.b32.xlu0 %v742, 64
    %v745 = vpop.permute.xlu0 %744
    %v747 = vmul.f32 %v730, %v745
    %v748 = vmul.f32 %v747, %v390
    %750 = vrot.lane.b32.xlu0 %v748, 32
    %v751 = vpop.permute.xlu0 %750
    %v752 = vsel %vm396, %v751, %v751
    %v754 = vsel %vm58, %v752, 0.0
    %755 = vadd.xlane.f32.xlu0 %v754
    %v756 = vpop.xlane.xlu0 %755
    %v757 = vadd.f32 %v756, %v406
    %v758 = vtanh.pop %v757
    %760 = vrot.lane.b32.xlu0 %v758, 4
    %v761 = vpop.permute.xlu0 %760
    %vm763 = vcmask 33824
    %764 = vst.msk [vmem:[#allocation7] sm:$0x3] %vm763, %v761
    %v765 = vld [vmem:[#allocation2 + $0xa] sm:$0x3]
    %v766 = vpack.c.bf16 %v747, %v747
    %768 = vrot.lane.b32.xlu0 %v766, 32
    %v769 = vpop.permute.xlu0 %768
    %v770 = vsel %vm417, %v769, %v769
    %772 = vmatprep.subr.bf16.mxu0 0
    %773 = vmatpush1.bf16.msra.mxu0 %v304
    %774 = vmatprep.subr.bf16.mxu0 0
    %775 = vmatpush1.bf16.msra.mxu0 %v305
    %776 = vmatprep.subr.bf16.mxu0 0
    %777 = vmatpush1.bf16.msra.mxu0 %v306
    %778 = vmatprep.subr.bf16.mxu0 0
    %779 = vmatpush1.bf16.msra.mxu0 %v307
    %780 = vmatprep.subr.bf16.mxu0 0
    %781 = vmatpush1.bf16.msra.mxu0 %v308
    %782 = vmatprep.subr.bf16.mxu0 0
    %783 = vmatpush1.bf16.msra.mxu0 %v309
    %784 = vmatprep.subr.bf16.mxu0 0
    %785 = vmatpush1.bf16.msra.mxu0 %v310
    %786 = vmatprep.subr.bf16.mxu0 0
    %787 = vmatpush1.bf16.msra.mxu0 %v311
    %788 = vmatprep.subr.bf16.mxu0 0
    %789 = vmatpush1.bf16.msra.mxu0 0
    %790 = vmatprep.subr.bf16.mxu0 0
    %791 = vmatpush1.bf16.msra.mxu0 0
    %792 = vmatprep.subr.bf16.mxu0 0
    %793 = vmatpush1.bf16.msra.mxu0 0
    %794 = vmatprep.subr.bf16.mxu0 0
    %795 = vmatpush1.bf16.msra.mxu0 0
    %796 = vmatprep.subr.bf16.mxu0 0
    %797 = vmatpush1.bf16.msra.mxu0 0
    %798 = vmatprep.subr.bf16.mxu0 0
    %799 = vmatpush1.bf16.msra.mxu0 0
    %800 = vmatprep.subr.bf16.mxu0 0
    %801 = vmatpush1.bf16.msra.mxu0 0
    %802 = vmatprep.subr.bf16.mxu0 0
    %803 = vmatpush1.bf16.msra.mxu0 0
    %804 = vmatprep.mubr.bf16.mxu0 0
    %805 = vmatmul.mubr.bf16.gmra.mrb[0].mxu0 %v770
    %v806 = vpop.f32.mrb[0].mxu0
    %v807 = vadd.f32 0.0, %v806
    %v808 = vpop.f32.mrb[0].mxu0
    %v809 = vpop.f32.mrb[0].mxu0
    %v810 = vpop.f32.mrb[0].mxu0
    %811 = vdwg.mxu0
    %v812 = vadd.f32 %v765, %v807
    %v813 = vmul.f32 %v812, 0.5
    %v814 = vsel %vm270, %v812, %v813
    %v815 = vtanh.pop %v814
    %v816 = vmul.f32 %v815, 0.5
    %v817 = vadd.f32 %v816, 0.5
    %v818 = vsel %vm270, %v815, %v817
    %v819 = vmul.f32 %v818, %v741
    %821 = vrot.lane.b32.xlu0 %v818, 64
    %v822 = vpop.permute.xlu0 %821
    %v824 = vmul.f32 %v818, %v822
    %826 = vrot.lane.b32.xlu0 %v824, 32
    %v827 = vpop.permute.xlu0 %826
    %v829 = vadd.f32 %v819, %v827
    %v830 = vtanh.pop %v829
    %832 = vrot.lane.b32.xlu0 %v830, 64
    %v833 = vpop.permute.xlu0 %832
    %v835 = vmul.f32 %v818, %v833
    %v836 = vmul.f32 %v835, %v390
    %838 = vrot.lane.b32.xlu0 %v836, 32
    %v839 = vpop.permute.xlu0 %838
    %v840 = vsel %vm396, %v839, %v839
    %v842 = vsel %vm58, %v840, 0.0
    %843 = vadd.xlane.f32.xlu0 %v842
    %v844 = vpop.xlane.xlu0 %843
    %v845 = vadd.f32 %v844, %v406
    %v846 = vtanh.pop %v845
    %848 = vrot.lane.b32.xlu0 %v846, 5
    %v849 = vpop.permute.xlu0 %848
    %vm851 = vcmask 42024
    %852 = vst.msk [vmem:[#allocation7] sm:$0x3] %vm851, %v849
    %v853 = vld [vmem:[#allocation2 + $0xc] sm:$0x3]
    %v854 = vpack.c.bf16 %v835, %v835
    %856 = vrot.lane.b32.xlu0 %v854, 32
    %v857 = vpop.permute.xlu0 %856
    %v858 = vsel %vm417, %v857, %v857
    %860 = vmatprep.subr.bf16.mxu0 0
    %861 = vmatpush1.bf16.msra.mxu0 %v304
    %862 = vmatprep.subr.bf16.mxu0 0
    %863 = vmatpush1.bf16.msra.mxu0 %v305
    %864 = vmatprep.subr.bf16.mxu0 0
    %865 = vmatpush1.bf16.msra.mxu0 %v306
    %866 = vmatprep.subr.bf16.mxu0 0
    %867 = vmatpush1.bf16.msra.mxu0 %v307
    %868 = vmatprep.subr.bf16.mxu0 0
    %869 = vmatpush1.bf16.msra.mxu0 %v308
    %870 = vmatprep.subr.bf16.mxu0 0
    %871 = vmatpush1.bf16.msra.mxu0 %v309
    %872 = vmatprep.subr.bf16.mxu0 0
    %873 = vmatpush1.bf16.msra.mxu0 %v310
    %874 = vmatprep.subr.bf16.mxu0 0
    %875 = vmatpush1.bf16.msra.mxu0 %v311
    %876 = vmatprep.subr.bf16.mxu0 0
    %877 = vmatpush1.bf16.msra.mxu0 0
    %878 = vmatprep.subr.bf16.mxu0 0
    %879 = vmatpush1.bf16.msra.mxu0 0
    %880 = vmatprep.subr.bf16.mxu0 0
    %881 = vmatpush1.bf16.msra.mxu0 0
    %882 = vmatprep.subr.bf16.mxu0 0
    %883 = vmatpush1.bf16.msra.mxu0 0
    %884 = vmatprep.subr.bf16.mxu0 0
    %885 = vmatpush1.bf16.msra.mxu0 0
    %886 = vmatprep.subr.bf16.mxu0 0
    %887 = vmatpush1.bf16.msra.mxu0 0
    %888 = vmatprep.subr.bf16.mxu0 0
    %889 = vmatpush1.bf16.msra.mxu0 0
    %890 = vmatprep.subr.bf16.mxu0 0
    %891 = vmatpush1.bf16.msra.mxu0 0
    %892 = vmatprep.mubr.bf16.mxu0 0
    %893 = vmatmul.mubr.bf16.gmra.mrb[0].mxu0 %v858
    %v894 = vpop.f32.mrb[0].mxu0
    %v895 = vadd.f32 0.0, %v894
    %v896 = vpop.f32.mrb[0].mxu0
    %v897 = vpop.f32.mrb[0].mxu0
    %v898 = vpop.f32.mrb[0].mxu0
    %899 = vdwg.mxu0
    %v900 = vadd.f32 %v853, %v895
    %v901 = vmul.f32 %v900, 0.5
    %v902 = vsel %vm270, %v900, %v901
    %v903 = vtanh.pop %v902
    %v904 = vmul.f32 %v903, 0.5
    %v905 = vadd.f32 %v904, 0.5
    %v906 = vsel %vm270, %v903, %v905
    %v907 = vmul.f32 %v906, %v829
    %909 = vrot.lane.b32.xlu0 %v906, 64
    %v910 = vpop.permute.xlu0 %909
    %v912 = vmul.f32 %v906, %v910
    %914 = vrot.lane.b32.xlu0 %v912, 32
    %v915 = vpop.permute.xlu0 %914
    %v917 = vadd.f32 %v907, %v915
    %v918 = vtanh.pop %v917
    %920 = vrot.lane.b32.xlu0 %v918, 64
    %v921 = vpop.permute.xlu0 %920
    %v923 = vmul.f32 %v906, %v921
    %v924 = vmul.f32 %v923, %v390
    %926 = vrot.lane.b32.xlu0 %v924, 32
    %v927 = vpop.permute.xlu0 %926
    %v928 = vsel %vm396, %v927, %v927
    %v930 = vsel %vm58, %v928, 0.0
    %931 = vadd.xlane.f32.xlu0 %v930
    %v932 = vpop.xlane.xlu0 %931
    %v933 = vadd.f32 %v932, %v406
    %v934 = vtanh.pop %v933
    %936 = vrot.lane.b32.xlu0 %v934, 6
    %v937 = vpop.permute.xlu0 %936
    %vm939 = vcmask 50224
    %940 = vst.msk [vmem:[#allocation7] sm:$0x3] %vm939, %v937
    %v941 = vld [vmem:[#allocation2 + $0xe] sm:$0x3]
    %v942 = vpack.c.bf16 %v923, %v923
    %944 = vrot.lane.b32.xlu0 %v942, 32
    %v945 = vpop.permute.xlu0 %944
    %v946 = vsel %vm417, %v945, %v945
    %948 = vmatprep.subr.bf16.mxu0 0
    %949 = vmatpush1.bf16.msra.mxu0 %v304
    %950 = vmatprep.subr.bf16.mxu0 0
    %951 = vmatpush1.bf16.msra.mxu0 %v305
    %952 = vmatprep.subr.bf16.mxu0 0
    %953 = vmatpush1.bf16.msra.mxu0 %v306
    %954 = vmatprep.subr.bf16.mxu0 0
    %955 = vmatpush1.bf16.msra.mxu0 %v307
    %956 = vmatprep.subr.bf16.mxu0 0
    %957 = vmatpush1.bf16.msra.mxu0 %v308
    %958 = vmatprep.subr.bf16.mxu0 0
    %959 = vmatpush1.bf16.msra.mxu0 %v309
    %960 = vmatprep.subr.bf16.mxu0 0
    %961 = vmatpush1.bf16.msra.mxu0 %v310
    %962 = vmatprep.subr.bf16.mxu0 0
    %963 = vmatpush1.bf16.msra.mxu0 %v311
    %964 = vmatprep.subr.bf16.mxu0 0
    %965 = vmatpush1.bf16.msra.mxu0 0
    %966 = vmatprep.subr.bf16.mxu0 0
    %967 = vmatpush1.bf16.msra.mxu0 0
    %968 = vmatprep.subr.bf16.mxu0 0
    %969 = vmatpush1.bf16.msra.mxu0 0
    %970 = vmatprep.subr.bf16.mxu0 0
    %971 = vmatpush1.bf16.msra.mxu0 0
    %972 = vmatprep.subr.bf16.mxu0 0
    %973 = vmatpush1.bf16.msra.mxu0 0
    %974 = vmatprep.subr.bf16.mxu0 0
    %975 = vmatpush1.bf16.msra.mxu0 0
    %976 = vmatprep.subr.bf16.mxu0 0
    %977 = vmatpush1.bf16.msra.mxu0 0
    %978 = vmatprep.subr.bf16.mxu0 0
    %979 = vmatpush1.bf16.msra.mxu0 0
    %980 = vmatprep.mubr.bf16.mxu0 0
    %981 = vmatmul.mubr.bf16.gmra.mrb[0].mxu0 %v946
    %v982 = vpop.f32.mrb[0].mxu0
    %v983 = vadd.f32 0.0, %v982
    %v984 = vpop.f32.mrb[0].mxu0
    %v985 = vpop.f32.mrb[0].mxu0
    %v986 = vpop.f32.mrb[0].mxu0
    %987 = vdwg.mxu0
    %v988 = vadd.f32 %v941, %v983
    %v989 = vmul.f32 %v988, 0.5
    %v990 = vsel %vm270, %v988, %v989
    %v991 = vtanh.pop %v990
    %v992 = vmul.f32 %v991, 0.5
    %v993 = vadd.f32 %v992, 0.5
    %v994 = vsel %vm270, %v991, %v993
    %v995 = vmul.f32 %v994, %v917
    %997 = vrot.lane.b32.xlu0 %v994, 64
    %v998 = vpop.permute.xlu0 %997
    %v1000 = vmul.f32 %v994, %v998
    %1002 = vrot.lane.b32.xlu0 %v1000, 32
    %v1003 = vpop.permute.xlu0 %1002
    %v1005 = vadd.f32 %v995, %v1003
    %v1006 = vtanh.pop %v1005
    %1008 = vrot.lane.b32.xlu0 %v1006, 64
    %v1009 = vpop.permute.xlu0 %1008
    %v1011 = vmul.f32 %v994, %v1009
    %v1012 = vmul.f32 %v1011, %v390
    %1014 = vrot.lane.b32.xlu0 %v1012, 32
    %v1015 = vpop.permute.xlu0 %1014
    %v1016 = vsel %vm396, %v1015, %v1015
    %v1018 = vsel %vm58, %v1016, 0.0
    %1019 = vadd.xlane.f32.xlu0 %v1018
    %v1020 = vpop.xlane.xlu0 %1019
    %v1021 = vadd.f32 %v1020, %v406
    %v1022 = vtanh.pop %v1021
    %1024 = vrot.lane.b32.xlu0 %v1022, 7
    %v1025 = vpop.permute.xlu0 %1024
    %vm1027 = vcmask 58424
    %1028 = vst.msk [vmem:[#allocation7] sm:$0x3] %vm1027, %v1025
    // Predicated region
    $region38: #{generator_forward.1} parent=1 // pred_check
      _
    $region39: #{generator_forward.1} parent=1 // pred_check_branch
      %1030 = sbr.rel (0) target = $region41
    $region40: #{generator_forward.1} parent=1 // pred_region
      %s1032 = ssub.s32 32, 32
      %1033 = vsyncadd [#allocation6], %s1032
      %s1035 = sshll.u32 [#allocation7], 4
      %s1036 = int_to_ptr.vmem [resolvable:$true] %s1035
      %1038 = dma.vmem_to_hbm [thread:$0]  %s1036, 32, %s8, [#allocation6]
    $region41: #{generator_forward.1} parent=1 // pred_fallthru
      _
    // Predicated region
    $region42: #{generator_forward.1} parent=1 // pred_check
      _
    $region43: #{generator_forward.1} parent=1 // pred_check_branch
      %1040 = sbr.rel (0) target = $region45
    $region44: #{generator_forward.1} parent=1 // pred_region
      %1041 = dma.done [#allocation6], 32
    $region45: #{generator_forward.1} parent=1 // pred_fallthru
      _
    %1042 = vsyncpa [#allocation5], 1
    %1043 = vsyncpa [#allocation6], 1

</llo_original>
